<compile_context>
chip_gen: v7x
topology: tpu7x:2x2x1
jax: 0.10.0
libtpu: 0.0.40
codegen_flags: <defaults>
</compile_context>

<pallas_src>
import functools

import jax
import jax.numpy as jnp
from jax.experimental import pallas as pl
from jax.experimental.pallas import tpu as pltpu


def _softplus(x):
    # numerically-stable single-exp softplus: max(x,0) + log(1 + exp(-|x|))
    return jnp.maximum(x, 0.0) + jnp.log(1.0 + jnp.exp(-jnp.abs(x)))


def _silu(x):
    return x * (1.0 / (1.0 + jnp.exp(-x)))


def vim_block_kernel(x_ref, gamma_ref, beta_ref,
                     wproj_ref, bproj_ref,
                     wfb_ref, bfb_ref,
                     wsel_ref, bdt_ref,
                     a_ref, dparam_ref,
                     out_ref,
                     u_s, delta_s, b_s, c_s, z_s,
                     *, chunk):
    S, D = x_ref.shape[1], x_ref.shape[2]
    N = a_ref.shape[0]            # d_state
    CS = chunk                    # scan chunk (sublane-aligned)

    x = x_ref[0].astype(jnp.float32)                       # (S, D)

    # ---- LayerNorm(dim), eps = 1e-5 (PyTorch default), biased variance ----
    mean = jnp.mean(x, axis=-1, keepdims=True)
    cent = x - mean
    var = jnp.mean(cent * cent, axis=-1, keepdims=True)
    xn = cent * jax.lax.rsqrt(var + 1e-5) * gamma_ref[0, :] + beta_ref[0, :]

    # ---- shared projection (z1 = proj(norm(x)) and x = proj(norm(x)) coincide) ----
    # bf16 MXU operands, f32 accumulation.
    xp = jnp.dot(xn.astype(wproj_ref.dtype), wproj_ref[...],
                 preferred_element_type=jnp.float32) + bproj_ref[0, :]
    z_s[...] = _silu(xp)                                    # SiLU gate, parked in VMEM

    # ---- fused forward/backward pointwise conv1d + softplus (one wide matmul) ----
    u_fb = _softplus(jnp.dot(xp.astype(wfb_ref.dtype), wfb_ref[...],
                             preferred_element_type=jnp.float32)
                     + bfb_ref[0, :])                       # (S, 2D) = [fwd | bwd]

    # ---- per-direction fused selection matmul: [delta_pre | B | C] ----
    # (dt low-rank chain already folded into wsel by the wrapper)
    for d in range(2):
        u_d = u_fb[:, d * D:(d + 1) * D]                    # (S, D)
        u_s[d] = u_d
        sel = jnp.dot(u_d.astype(wsel_ref.dtype), wsel_ref[...],
                      preferred_element_type=jnp.float32)   # (S, D + 2N)
        delta_s[d] = _softplus(sel[:, :D] + bdt_ref[0, :])
        b_s[d] = sel[:, D:D + N]
        c_s[d] = sel[:, D + N:D + 2 * N]

    a_t = a_ref[...]                                        # (N, D) == (-exp(A_log)).T
    dp = dparam_ref[0, :]                                   # (D,)

    # ---- chunked selective scan: per-direction state h is (N, D), features on lanes ----
    def chunk_body(ci, carry):
        h0, h1 = carry
        s0 = pl.multiple_of(ci * CS, CS)

        # bulk, sublane-dense tile loads for this chunk
        d0 = delta_s[0, pl.ds(s0, CS), :]                   # (CS, D)
        d1 = delta_s[1, pl.ds(s0, CS), :]
        u0 = u_s[0, pl.ds(s0, CS), :]
        u1 = u_s[1, pl.ds(s0, CS), :]
        b0 = b_s[0, pl.ds(s0, CS), :]                       # (CS, N)
        b1 = b_s[1, pl.ds(s0, CS), :]
        c0 = c_s[0, pl.ds(s0, CS), :]
        c1 = c_s[1, pl.ds(s0, CS), :]

        du0 = d0 * u0
        du1 = d1 * u1

        # chunk-ahead precompute: nothing here depends on the carried state h,
        # so the EUP exps and the B*delta*u outer products overlap the
        # recurrence of neighbouring steps instead of sitting on its chain.
        dA0, dA1, dBu0, dBu1, cc0, cc1 = [], [], [], [], [], []
        for t in range(CS):
            dA0.append(jnp.exp(d0[t:t + 1, :] * a_t))                       # (N, D)
            dA1.append(jnp.exp(d1[t:t + 1, :] * a_t))
            dBu0.append(b0[t:t + 1, :].reshape(N, 1) * du0[t:t + 1, :])     # (N, D)
            dBu1.append(b1[t:t + 1, :].reshape(N, 1) * du1[t:t + 1, :])
            cc0.append(c0[t:t + 1, :].reshape(N, 1))                        # (N, 1)
            cc1.append(c1[t:t + 1, :].reshape(N, 1))

        # serial recurrence, fully unrolled: 1 mul + 1 add per direction per step
        ys = []
        for t in range(CS):
            h0 = dA0[t] * h0 + dBu0[t]
            h1 = dA1[t] * h1 + dBu1[t]
            # y_fwd + y_bwd fused into a single reduction (off the h chain)
            ys.append(jnp.sum(h0 * cc0[t] + h1 * cc1[t], axis=0, keepdims=True))

        # fold direction-sum, D-skip, SiLU gate and residual into one chunk store
        y = jnp.concatenate(ys, axis=0) + (u0 + u1) * dp    # (CS, D)
        z_blk = z_s[pl.ds(s0, CS), :]
        x_blk = x_ref[0, pl.ds(s0, CS), :].astype(jnp.float32)
        out_ref[0, pl.ds(s0, CS), :] = (y * z_blk + x_blk).astype(out_ref.dtype)
        return h0, h1

    h_init = jnp.zeros((N, D), jnp.float32)
    jax.lax.fori_loop(0, S // CS, chunk_body, (h_init, h_init))


def vim_block(x, params):
    B, S, D = x.shape
    N = params['A_log'].shape[1]
    R = params['w_dt'].shape[0]
    dim_inner = params['w_dt'].shape[1]
    assert dim_inner == D, "dim_inner must equal dim (required by the module's elementwise ops)"

    CS = 8 if S % 8 == 0 else 1   # scan chunk; 8 = sublane-aligned fast path

    f32 = jnp.float32
    bf16 = jnp.bfloat16

    # ---- constant preprocessing hoisted out of the kernel ----
    a_t = (-jnp.exp(params['A_log'])).T.astype(f32)                         # (N, D)
    w_fb = jnp.concatenate([params['w_fwd'], params['w_bwd']], axis=1).astype(bf16)   # (D, 2D)
    b_fb = jnp.concatenate([params['b_fwd'], params['b_bwd']], axis=1).astype(f32)    # (1, 2D)
    # fold the low-rank dt chain: delta_pre = u @ (w_dbc[:, :R] @ w_dt) + b_dt
    w_delta = (params['w_dbc'][:, :R] @ params['w_dt']).astype(f32)          # (D, D)
    w_sel = jnp.concatenate([w_delta, params['w_dbc'][:, R:]], axis=1).astype(bf16)   # (D, D+2N)
    w_proj = params['w_proj'].astype(bf16)

    args = (x,
            params['gamma'].astype(f32), params['beta'].astype(f32),
            w_proj, params['b_proj'].astype(f32),
            w_fb, b_fb,
            w_sel, params['b_dt'].astype(f32),
            a_t, params['D'].astype(f32))

    def const_spec(a):
        nd = a.ndim
        return pl.BlockSpec(a.shape, lambda b, _nd=nd: (0,) * _nd)

    in_specs = ([pl.BlockSpec((1, S, D), lambda b: (b, 0, 0))]
                + [const_spec(a) for a in args[1:]])
    out_specs = pl.BlockSpec((1, S, D), lambda b: (b, 0, 0))

    scratch_shapes = [
        pltpu.VMEM((2, S, D), f32),   # u = softplus(conv(xp)), per direction
        pltpu.VMEM((2, S, D), f32),   # delta
        pltpu.VMEM((2, S, N), f32),   # B
        pltpu.VMEM((2, S, N), f32),   # C
        pltpu.VMEM((S, D), f32),      # z gate (no y scratch: out written per chunk)
    ]

    grid_spec = pltpu.PrefetchScalarGridSpec(
        num_scalar_prefetch=0,
        grid=(B,),
        in_specs=in_specs,
        out_specs=out_specs,
        scratch_shapes=scratch_shapes,
    )

    # explicit scoped-VMEM budget sized from the real per-batch footprint
    scratch_bytes = 4 * (2 * 2 * S * D + 2 * 2 * S * N + S * D)
    block_bytes = 2 * 2 * (S * D * x.dtype.itemsize)          # double-buffered x/out blocks
    const_bytes = 2 * sum(int(a.size) * a.dtype.itemsize for a in args[1:])
    vmem_limit = int(min(100 * 2 ** 20,
                         max(32 * 2 ** 20,
                             2 * (scratch_bytes + block_bytes + const_bytes))))

    # advisory cost estimate so XLA schedules neighbouring ops sensibly
    matmul_flops = (2 * S * D * D                   # proj
                    + 2 * S * D * (2 * D)           # fused fwd/bwd conv
                    + 2 * 2 * S * D * (D + 2 * N))  # folded delta/B/C projection
    scan_flops = 2 * S * (10 * N * D)
    cost = pl.CostEstimate(
        flops=int(B * (matmul_flops + scan_flops + 10 * S * D)),
        transcendentals=int(B * (S * D + 2 * S * (2 * D) + 2 * S * D + 2 * S * N * D)),
        bytes_accessed=int(2 * int(x.size) * x.dtype.itemsize
                           + sum(int(a.size) * a.dtype.itemsize for a in args[1:])))

    return pl.pallas_call(
        functools.partial(vim_block_kernel, chunk=CS),
        out_shape=jax.ShapeDtypeStruct((B, S, D), jnp.float32),
        grid_spec=grid_spec,
        compiler_params=pltpu.CompilerParams(
            dimension_semantics=("parallel",),
            vmem_limit_bytes=vmem_limit),
        cost_estimate=cost,
    )(*args)


# ---------------- pure-JAX f32 reference (same math, for validation) ----------------
def vim_block_ref(x, p):
    B, S, D = x.shape
    mean = jnp.mean(x, axis=-1, keepdims=True)
    var = jnp.mean((x - mean) ** 2, axis=-1, keepdims=True)
    xn = (x - mean) / jnp.sqrt(var + 1e-5) * p['gamma'][0] + p['beta'][0]
    xp = xn @ p['w_proj'] + p['b_proj'][0]
    z = xp * jax.nn.sigmoid(xp)
    u1 = jax.nn.softplus(xp @ p['w_fwd'] + p['b_fwd'][0])
    u2 = jax.nn.softplus(xp @ p['w_bwd'] + p['b_bwd'][0])

    A = -jnp.exp(p['A_log'])
    Dp = p['D'][0]
    R = p['w_dt'].shape[0]
    N = p['A_log'].shape[1]

    def ssm(u):                                   # u: (B, S, Din)
        dbc = u @ p['w_dbc']
        delta = jax.nn.softplus(dbc[..., :R] @ p['w_dt'] + p['b_dt'][0])
        Bm = dbc[..., R:R + N]
        Cm = dbc[..., R + N:]
        deltaA = jnp.exp(jnp.einsum('bsd,dn->bsdn', delta, A))
        dBu = jnp.einsum('bsd,bsn,bsd->bsdn', delta, Bm, u)

        def step(h, inp):
            dA_i, dBu_i, C_i = inp
            h = dA_i * h + dBu_i
            return h, jnp.einsum('bdn,bn->bd', h, C_i)

        h0 = jnp.zeros((B, D, N), jnp.float32)
        _, ys = jax.lax.scan(step, h0, (deltaA.transpose(1, 0, 2, 3),
                                        dBu.transpose(1, 0, 2, 3),
                                        Cm.transpose(1, 0, 2)))
        return ys.transpose(1, 0, 2) + u * Dp

    x1 = ssm(u1)
    x2 = ssm(u2)
    return x1 * z + x2 * z + x


if __name__ == "__main__":
    # D = 128 so the lane slices / output stores exercise the lane-dense path;
    # S = 16 exercises two scan chunks.
    B, S = 2, 16
    dim, dt_rank, d_state = 128, 8, 8
    dim_inner = dim   # required by the reference semantics (elementwise ops vs. x)
    f32 = jnp.float32

    key = jax.random.PRNGKey(0)
    keys = jax.random.split(key, 10)

    params = {
        'gamma': jnp.ones((1, dim), f32),
        'beta': jnp.zeros((1, dim), f32),
        'w_proj': 0.02 * jax.random.normal(keys[0], (dim, dim), f32),
        'b_proj': 0.02 * jax.random.normal(keys[1], (1, dim), f32),
        'w_fwd': 0.02 * jax.random.normal(keys[2], (dim, dim), f32),
        'b_fwd': 0.02 * jax.random.normal(keys[3], (1, dim), f32),
        'w_bwd': 0.02 * jax.random.normal(keys[4], (dim, dim), f32),
        'b_bwd': 0.02 * jax.random.normal(keys[5], (1, dim), f32),
        'w_dbc': 0.02 * jax.random.normal(keys[6], (dim, dt_rank + 2 * d_state), f32),
        'w_dt': 0.02 * jax.random.normal(keys[7], (dt_rank, dim_inner), f32),
        'b_dt': 0.02 * jax.random.normal(keys[8], (1, dim_inner), f32),
        'A_log': jnp.log(jnp.tile(jnp.arange(1, d_state + 1, dtype=f32)[None, :],
                                  (dim_inner, 1))),
        'D': jnp.ones((1, dim_inner), f32),
    }

    x = jax.random.normal(keys[9], (B, S, dim), f32)

    out = jax.block_until_ready(vim_block(x, params))
    ref = vim_block_ref(x, params)
    assert out.shape == (B, S, dim)
    err = float(jnp.max(jnp.abs(out - ref)))
    # bf16 MXU operands (f32 accumulation / f32 scan state) vs a pure-f32 reference
    assert jnp.allclose(out, ref, atol=1e-2, rtol=1e-2), err
    print("KERNEL_OK")
</pallas_src>

<mosaic_0001>
module attributes {stable_mosaic.version = 11 : i64} {
  func.func @vim_block_kernel(%arg0: i32, %arg1: memref<1x16x128xf32, #tpu.memory_space<vmem>>, %arg2: memref<1x128xf32, #tpu.memory_space<vmem>>, %arg3: memref<1x128xf32, #tpu.memory_space<vmem>>, %arg4: memref<128x128xbf16, #tpu.memory_space<vmem>>, %arg5: memref<1x128xf32, #tpu.memory_space<vmem>>, %arg6: memref<128x256xbf16, #tpu.memory_space<vmem>>, %arg7: memref<1x256xf32, #tpu.memory_space<vmem>>, %arg8: memref<128x144xbf16, #tpu.memory_space<vmem>>, %arg9: memref<1x128xf32, #tpu.memory_space<vmem>>, %arg10: memref<8x128xf32, #tpu.memory_space<vmem>>, %arg11: memref<1x128xf32, #tpu.memory_space<vmem>>, %arg12: memref<1x16x128xf32, #tpu.memory_space<vmem>>, %arg13: memref<2x16x128xf32, #tpu.memory_space<vmem>>, %arg14: memref<2x16x128xf32, #tpu.memory_space<vmem>>, %arg15: memref<2x16x8xf32, #tpu.memory_space<vmem>>, %arg16: memref<2x16x8xf32, #tpu.memory_space<vmem>>, %arg17: memref<16x128xf32, #tpu.memory_space<vmem>>) attributes {dimension_semantics = [#tpu.dimension_semantics<parallel>], iteration_bounds = array<i64: 2>, scalar_prefetch = 0 : i64, scratch_operands = 5 : i64, tpu.core_type = #tpu.core_type<tc>, window_params = [{transform_indices = @transform_0, window_bounds = array<i64: 1, 16, 128>}, {pipeline_mode = #tpu.pipeline_mode<synchronous>, transform_indices = @transform_1, window_bounds = array<i64: 1, 128>}, {pipeline_mode = #tpu.pipeline_mode<synchronous>, transform_indices = @transform_2, window_bounds = array<i64: 1, 128>}, {pipeline_mode = #tpu.pipeline_mode<synchronous>, transform_indices = @transform_3, window_bounds = array<i64: 128, 128>}, {pipeline_mode = #tpu.pipeline_mode<synchronous>, transform_indices = @transform_4, window_bounds = array<i64: 1, 128>}, {pipeline_mode = #tpu.pipeline_mode<synchronous>, transform_indices = @transform_5, window_bounds = array<i64: 128, 256>}, {pipeline_mode = #tpu.pipeline_mode<synchronous>, transform_indices = @transform_6, window_bounds = array<i64: 1, 256>}, {pipeline_mode = #tpu.pipeline_mode<synchronous>, transform_indices = @transform_7, window_bounds = array<i64: 128, 144>}, {pipeline_mode = #tpu.pipeline_mode<synchronous>, transform_indices = @transform_8, window_bounds = array<i64: 1, 128>}, {pipeline_mode = #tpu.pipeline_mode<synchronous>, transform_indices = @transform_9, window_bounds = array<i64: 8, 128>}, {pipeline_mode = #tpu.pipeline_mode<synchronous>, transform_indices = @transform_10, window_bounds = array<i64: 1, 128>}, {transform_indices = @transform_11, window_bounds = array<i64: 1, 16, 128>}]} {
    %c0 = arith.constant 0 : index
    %c0_0 = arith.constant 0 : index
    %c0_1 = arith.constant 0 : index
    %0 = vector.load %arg1[%c0, %c0_0, %c0_1] : memref<1x16x128xf32, #tpu.memory_space<vmem>>, vector<1x16x128xf32>
    %1 = vector.shape_cast %0 : vector<1x16x128xf32> to vector<16x128xf32>
    %cst = arith.constant dense<0.000000e+00> : vector<16xf32>
    %2 = vector.multi_reduction <add>, %1, %cst [1] : vector<16x128xf32> to vector<16xf32>
    %3 = vector.shape_cast %2 : vector<16xf32> to vector<16x1xf32>
    %cst_2 = arith.constant 1.280000e+02 : f32
    %4 = vector.broadcast %cst_2 : f32 to vector<16x1xf32>
    %5 = arith.divf %3, %4 : vector<16x1xf32>
    %6 = vector.broadcast %5 : vector<16x1xf32> to vector<16x128xf32>
    %7 = arith.subf %1, %6 : vector<16x128xf32>
    %8 = arith.mulf %7, %7 : vector<16x128xf32>
    %cst_3 = arith.constant dense<0.000000e+00> : vector<16xf32>
    %9 = vector.multi_reduction <add>, %8, %cst_3 [1] : vector<16x128xf32> to vector<16xf32>
    %10 = vector.shape_cast %9 : vector<16xf32> to vector<16x1xf32>
    %cst_4 = arith.constant 1.280000e+02 : f32
    %11 = vector.broadcast %cst_4 : f32 to vector<16x1xf32>
    %12 = arith.divf %10, %11 : vector<16x1xf32>
    %cst_5 = arith.constant 9.99999974E-6 : f32
    %13 = vector.broadcast %cst_5 : f32 to vector<16x1xf32>
    %14 = arith.addf %12, %13 : vector<16x1xf32>
    %15 = math.rsqrt %14 : vector<16x1xf32>
    %16 = vector.broadcast %15 : vector<16x1xf32> to vector<16x128xf32>
    %17 = arith.mulf %7, %16 : vector<16x128xf32>
    %c0_6 = arith.constant 0 : index
    %c0_7 = arith.constant 0 : index
    %18 = vector.load %arg2[%c0_6, %c0_7] : memref<1x128xf32, #tpu.memory_space<vmem>>, vector<1x128xf32>
    %19 = vector.shape_cast %18 : vector<1x128xf32> to vector<128xf32>
    %20 = vector.shape_cast %19 : vector<128xf32> to vector<1x128xf32>
    %21 = vector.broadcast %20 : vector<1x128xf32> to vector<16x128xf32>
    %22 = arith.mulf %17, %21 : vector<16x128xf32>
    %c0_8 = arith.constant 0 : index
    %c0_9 = arith.constant 0 : index
    %23 = vector.load %arg3[%c0_8, %c0_9] : memref<1x128xf32, #tpu.memory_space<vmem>>, vector<1x128xf32>
    %24 = vector.shape_cast %23 : vector<1x128xf32> to vector<128xf32>
    %25 = vector.shape_cast %24 : vector<128xf32> to vector<1x128xf32>
    %26 = vector.broadcast %25 : vector<1x128xf32> to vector<16x128xf32>
    %27 = arith.addf %22, %26 : vector<16x128xf32>
    %28 = arith.truncf %27 : vector<16x128xf32> to vector<16x128xbf16>
    %c0_10 = arith.constant 0 : index
    %c0_11 = arith.constant 0 : index
    %29 = vector.load %arg4[%c0_10, %c0_11] : memref<128x128xbf16, #tpu.memory_space<vmem>>, vector<128x128xbf16>
    %cst_12 = arith.constant dense<0.000000e+00> : vector<16x128xf32>
    %30 = tpu.matmul %28, %29, %cst_12 {dimension_numbers = #tpu.dot_dimension_numbers<[1], [0], [0], [1], [0, 0, 1, 1], [], []>} : vector<16x128xbf16>, vector<128x128xbf16>, vector<16x128xf32> -> vector<16x128xf32>
    %c0_13 = arith.constant 0 : index
    %c0_14 = arith.constant 0 : index
    %31 = vector.load %arg5[%c0_13, %c0_14] : memref<1x128xf32, #tpu.memory_space<vmem>>, vector<1x128xf32>
    %32 = vector.shape_cast %31 : vector<1x128xf32> to vector<128xf32>
    %33 = vector.shape_cast %32 : vector<128xf32> to vector<1x128xf32>
    %34 = vector.broadcast %33 : vector<1x128xf32> to vector<16x128xf32>
    %35 = arith.addf %30, %34 : vector<16x128xf32>
    %cst_15 = arith.constant 0.000000e+00 : f32
    %36 = vector.broadcast %cst_15 : f32 to vector<16x128xf32>
    %37 = arith.subf %36, %35 : vector<16x128xf32>
    %38 = math.exp %37 : vector<16x128xf32>
    %cst_16 = arith.constant 1.000000e+00 : f32
    %39 = vector.broadcast %cst_16 : f32 to vector<16x128xf32>
    %40 = arith.addf %39, %38 : vector<16x128xf32>
    %cst_17 = arith.constant 1.000000e+00 : f32
    %41 = vector.broadcast %cst_17 : f32 to vector<16x128xf32>
    %42 = arith.divf %41, %40 : vector<16x128xf32>
    %43 = arith.mulf %35, %42 : vector<16x128xf32>
    %c0_18 = arith.constant 0 : index
    %c0_19 = arith.constant 0 : index
    %44 = vector.load %arg17[%c0_18, %c0_19] : memref<16x128xf32, #tpu.memory_space<vmem>>, vector<16x128xf32>
    tpu.vector_store %arg17[%c0_18, %c0_19], %43 {strides = array<i32>} : memref<16x128xf32, #tpu.memory_space<vmem>>, vector<16x128xf32>,
    %45 = arith.truncf %35 : vector<16x128xf32> to vector<16x128xbf16>
    %c0_20 = arith.constant 0 : index
    %c0_21 = arith.constant 0 : index
    %46 = vector.load %arg6[%c0_20, %c0_21] : memref<128x256xbf16, #tpu.memory_space<vmem>>, vector<128x256xbf16>
    %cst_22 = arith.constant dense<0.000000e+00> : vector<16x256xf32>
    %47 = tpu.matmul %45, %46, %cst_22 {dimension_numbers = #tpu.dot_dimension_numbers<[1], [0], [0], [1], [0, 0, 1, 1], [], []>} : vector<16x128xbf16>, vector<128x256xbf16>, vector<16x256xf32> -> vector<16x256xf32>
    %c0_23 = arith.constant 0 : index
    %c0_24 = arith.constant 0 : index
    %48 = vector.load %arg7[%c0_23, %c0_24] : memref<1x256xf32, #tpu.memory_space<vmem>>, vector<1x256xf32>
    %49 = vector.shape_cast %48 : vector<1x256xf32> to vector<256xf32>
    %50 = vector.shape_cast %49 : vector<256xf32> to vector<1x256xf32>
    %51 = vector.broadcast %50 : vector<1x256xf32> to vector<16x256xf32>
    %52 = arith.addf %47, %51 : vector<16x256xf32>
    %cst_25 = arith.constant 0.000000e+00 : f32
    %53 = vector.broadcast %cst_25 : f32 to vector<16x256xf32>
    %54 = arith.maximumf %52, %53 : vector<16x256xf32>
    %55 = math.absf %52 : vector<16x256xf32>
    %cst_26 = arith.constant 0.000000e+00 : f32
    %56 = vector.broadcast %cst_26 : f32 to vector<16x256xf32>
    %57 = arith.subf %56, %55 : vector<16x256xf32>
    %58 = math.exp %57 : vector<16x256xf32>
    %cst_27 = arith.constant 1.000000e+00 : f32
    %59 = vector.broadcast %cst_27 : f32 to vector<16x256xf32>
    %60 = arith.addf %59, %58 : vector<16x256xf32>
    %61 = math.log %60 : vector<16x256xf32>
    %62 = arith.addf %54, %61 : vector<16x256xf32>
    %63 = vector.extract_strided_slice %62 {offsets = [0, 0], sizes = [16, 128], strides = [1, 1]} : vector<16x256xf32> to vector<16x128xf32>
    %c0_28 = arith.constant 0 : index
    %c0_29 = arith.constant 0 : index
    %c0_30 = arith.constant 0 : index
    %64 = vector.load %arg13[%c0_28, %c0_29, %c0_30] : memref<2x16x128xf32, #tpu.memory_space<vmem>>, vector<1x16x128xf32>
    %65 = vector.shape_cast %64 : vector<1x16x128xf32> to vector<16x128xf32>
    %66 = vector.shape_cast %63 : vector<16x128xf32> to vector<1x16x128xf32>
    tpu.vector_store %arg13[%c0_28, %c0_29, %c0_30], %66 {strides = array<i32>} : memref<2x16x128xf32, #tpu.memory_space<vmem>>, vector<1x16x128xf32>,
    %67 = arith.truncf %63 : vector<16x128xf32> to vector<16x128xbf16>
    %c0_31 = arith.constant 0 : index
    %c0_32 = arith.constant 0 : index
    %68 = vector.load %arg8[%c0_31, %c0_32] : memref<128x144xbf16, #tpu.memory_space<vmem>>, vector<128x144xbf16>
    %cst_33 = arith.constant dense<0.000000e+00> : vector<16x144xf32>
    %69 = tpu.matmul %67, %68, %cst_33 {dimension_numbers = #tpu.dot_dimension_numbers<[1], [0], [0], [1], [0, 0, 1, 1], [], []>} : vector<16x128xbf16>, vector<128x144xbf16>, vector<16x144xf32> -> vector<16x144xf32>
    %70 = vector.extract_strided_slice %69 {offsets = [0, 0], sizes = [16, 128], strides = [1, 1]} : vector<16x144xf32> to vector<16x128xf32>
    %c0_34 = arith.constant 0 : index
    %c0_35 = arith.constant 0 : index
    %71 = vector.load %arg9[%c0_34, %c0_35] : memref<1x128xf32, #tpu.memory_space<vmem>>, vector<1x128xf32>
    %72 = vector.shape_cast %71 : vector<1x128xf32> to vector<128xf32>
    %73 = vector.shape_cast %72 : vector<128xf32> to vector<1x128xf32>
    %74 = vector.broadcast %73 : vector<1x128xf32> to vector<16x128xf32>
    %75 = arith.addf %70, %74 : vector<16x128xf32>
    %cst_36 = arith.constant 0.000000e+00 : f32
    %76 = vector.broadcast %cst_36 : f32 to vector<16x128xf32>
    %77 = arith.maximumf %75, %76 : vector<16x128xf32>
    %78 = math.absf %75 : vector<16x128xf32>
    %cst_37 = arith.constant 0.000000e+00 : f32
    %79 = vector.broadcast %cst_37 : f32 to vector<16x128xf32>
    %80 = arith.subf %79, %78 : vector<16x128xf32>
    %81 = math.exp %80 : vector<16x128xf32>
    %cst_38 = arith.constant 1.000000e+00 : f32
    %82 = vector.broadcast %cst_38 : f32 to vector<16x128xf32>
    %83 = arith.addf %82, %81 : vector<16x128xf32>
    %84 = math.log %83 : vector<16x128xf32>
    %85 = arith.addf %77, %84 : vector<16x128xf32>
    %c0_39 = arith.constant 0 : index
    %c0_40 = arith.constant 0 : index
    %c0_41 = arith.constant 0 : index
    %86 = vector.load %arg14[%c0_39, %c0_40, %c0_41] : memref<2x16x128xf32, #tpu.memory_space<vmem>>, vector<1x16x128xf32>
    %87 = vector.shape_cast %86 : vector<1x16x128xf32> to vector<16x128xf32>
    %88 = vector.shape_cast %85 : vector<16x128xf32> to vector<1x16x128xf32>
    tpu.vector_store %arg14[%c0_39, %c0_40, %c0_41], %88 {strides = array<i32>} : memref<2x16x128xf32, #tpu.memory_space<vmem>>, vector<1x16x128xf32>,
    %89 = vector.extract_strided_slice %69 {offsets = [0, 128], sizes = [16, 8], strides = [1, 1]} : vector<16x144xf32> to vector<16x8xf32>
    %c0_42 = arith.constant 0 : index
    %c0_43 = arith.constant 0 : index
    %c0_44 = arith.constant 0 : index
    %90 = vector.load %arg15[%c0_42, %c0_43, %c0_44] : memref<2x16x8xf32, #tpu.memory_space<vmem>>, vector<1x16x8xf32>
    %91 = vector.shape_cast %90 : vector<1x16x8xf32> to vector<16x8xf32>
    %92 = vector.shape_cast %89 : vector<16x8xf32> to vector<1x16x8xf32>
    tpu.vector_store %arg15[%c0_42, %c0_43, %c0_44], %92 {strides = array<i32>} : memref<2x16x8xf32, #tpu.memory_space<vmem>>, vector<1x16x8xf32>,
    %93 = vector.extract_strided_slice %69 {offsets = [0, 136], sizes = [16, 8], strides = [1, 1]} : vector<16x144xf32> to vector<16x8xf32>
    %c0_45 = arith.constant 0 : index
    %c0_46 = arith.constant 0 : index
    %c0_47 = arith.constant 0 : index
    %94 = vector.load %arg16[%c0_45, %c0_46, %c0_47] : memref<2x16x8xf32, #tpu.memory_space<vmem>>, vector<1x16x8xf32>
    %95 = vector.shape_cast %94 : vector<1x16x8xf32> to vector<16x8xf32>
    %96 = vector.shape_cast %93 : vector<16x8xf32> to vector<1x16x8xf32>
    tpu.vector_store %arg16[%c0_45, %c0_46, %c0_47], %96 {strides = array<i32>} : memref<2x16x8xf32, #tpu.memory_space<vmem>>, vector<1x16x8xf32>,
    %97 = vector.extract_strided_slice %62 {offsets = [0, 128], sizes = [16, 128], strides = [1, 1]} : vector<16x256xf32> to vector<16x128xf32>
    %c1 = arith.constant 1 : index
    %c0_48 = arith.constant 0 : index
    %c0_49 = arith.constant 0 : index
    %98 = vector.load %arg13[%c1, %c0_48, %c0_49] : memref<2x16x128xf32, #tpu.memory_space<vmem>>, vector<1x16x128xf32>
    %99 = vector.shape_cast %98 : vector<1x16x128xf32> to vector<16x128xf32>
    %100 = vector.shape_cast %97 : vector<16x128xf32> to vector<1x16x128xf32>
    tpu.vector_store %arg13[%c1, %c0_48, %c0_49], %100 {strides = array<i32>} : memref<2x16x128xf32, #tpu.memory_space<vmem>>, vector<1x16x128xf32>,
    %101 = arith.truncf %97 : vector<16x128xf32> to vector<16x128xbf16>
    %c0_50 = arith.constant 0 : index
    %c0_51 = arith.constant 0 : index
    %102 = vector.load %arg8[%c0_50, %c0_51] : memref<128x144xbf16, #tpu.memory_space<vmem>>, vector<128x144xbf16>
    %cst_52 = arith.constant dense<0.000000e+00> : vector<16x144xf32>
    %103 = tpu.matmul %101, %102, %cst_52 {dimension_numbers = #tpu.dot_dimension_numbers<[1], [0], [0], [1], [0, 0, 1, 1], [], []>} : vector<16x128xbf16>, vector<128x144xbf16>, vector<16x144xf32> -> vector<16x144xf32>
    %104 = vector.extract_strided_slice %103 {offsets = [0, 0], sizes = [16, 128], strides = [1, 1]} : vector<16x144xf32> to vector<16x128xf32>
    %c0_53 = arith.constant 0 : index
    %c0_54 = arith.constant 0 : index
    %105 = vector.load %arg9[%c0_53, %c0_54] : memref<1x128xf32, #tpu.memory_space<vmem>>, vector<1x128xf32>
    %106 = vector.shape_cast %105 : vector<1x128xf32> to vector<128xf32>
    %107 = vector.shape_cast %106 : vector<128xf32> to vector<1x128xf32>
    %108 = vector.broadcast %107 : vector<1x128xf32> to vector<16x128xf32>
    %109 = arith.addf %104, %108 : vector<16x128xf32>
    %cst_55 = arith.constant 0.000000e+00 : f32
    %110 = vector.broadcast %cst_55 : f32 to vector<16x128xf32>
    %111 = arith.maximumf %109, %110 : vector<16x128xf32>
    %112 = math.absf %109 : vector<16x128xf32>
    %cst_56 = arith.constant 0.000000e+00 : f32
    %113 = vector.broadcast %cst_56 : f32 to vector<16x128xf32>
    %114 = arith.subf %113, %112 : vector<16x128xf32>
    %115 = math.exp %114 : vector<16x128xf32>
    %cst_57 = arith.constant 1.000000e+00 : f32
    %116 = vector.broadcast %cst_57 : f32 to vector<16x128xf32>
    %117 = arith.addf %116, %115 : vector<16x128xf32>
    %118 = math.log %117 : vector<16x128xf32>
    %119 = arith.addf %111, %118 : vector<16x128xf32>
    %c1_58 = arith.constant 1 : index
    %c0_59 = arith.constant 0 : index
    %c0_60 = arith.constant 0 : index
    %120 = vector.load %arg14[%c1_58, %c0_59, %c0_60] : memref<2x16x128xf32, #tpu.memory_space<vmem>>, vector<1x16x128xf32>
    %121 = vector.shape_cast %120 : vector<1x16x128xf32> to vector<16x128xf32>
    %122 = vector.shape_cast %119 : vector<16x128xf32> to vector<1x16x128xf32>
    tpu.vector_store %arg14[%c1_58, %c0_59, %c0_60], %122 {strides = array<i32>} : memref<2x16x128xf32, #tpu.memory_space<vmem>>, vector<1x16x128xf32>,
    %123 = vector.extract_strided_slice %103 {offsets = [0, 128], sizes = [16, 8], strides = [1, 1]} : vector<16x144xf32> to vector<16x8xf32>
    %c1_61 = arith.constant 1 : index
    %c0_62 = arith.constant 0 : index
    %c0_63 = arith.constant 0 : index
    %124 = vector.load %arg15[%c1_61, %c0_62, %c0_63] : memref<2x16x8xf32, #tpu.memory_space<vmem>>, vector<1x16x8xf32>
    %125 = vector.shape_cast %124 : vector<1x16x8xf32> to vector<16x8xf32>
    %126 = vector.shape_cast %123 : vector<16x8xf32> to vector<1x16x8xf32>
    tpu.vector_store %arg15[%c1_61, %c0_62, %c0_63], %126 {strides = array<i32>} : memref<2x16x8xf32, #tpu.memory_space<vmem>>, vector<1x16x8xf32>,
    %127 = vector.extract_strided_slice %103 {offsets = [0, 136], sizes = [16, 8], strides = [1, 1]} : vector<16x144xf32> to vector<16x8xf32>
    %c1_64 = arith.constant 1 : index
    %c0_65 = arith.constant 0 : index
    %c0_66 = arith.constant 0 : index
    %128 = vector.load %arg16[%c1_64, %c0_65, %c0_66] : memref<2x16x8xf32, #tpu.memory_space<vmem>>, vector<1x16x8xf32>
    %129 = vector.shape_cast %128 : vector<1x16x8xf32> to vector<16x8xf32>
    %130 = vector.shape_cast %127 : vector<16x8xf32> to vector<1x16x8xf32>
    tpu.vector_store %arg16[%c1_64, %c0_65, %c0_66], %130 {strides = array<i32>} : memref<2x16x8xf32, #tpu.memory_space<vmem>>, vector<1x16x8xf32>,
    %c0_67 = arith.constant 0 : index
    %c0_68 = arith.constant 0 : index
    %131 = vector.load %arg10[%c0_67, %c0_68] : memref<8x128xf32, #tpu.memory_space<vmem>>, vector<8x128xf32>
    %c0_69 = arith.constant 0 : index
    %c0_70 = arith.constant 0 : index
    %132 = vector.load %arg11[%c0_69, %c0_70] : memref<1x128xf32, #tpu.memory_space<vmem>>, vector<1x128xf32>
    %133 = vector.shape_cast %132 : vector<1x128xf32> to vector<128xf32>
    %cst_71 = arith.constant 0.000000e+00 : f32
    %134 = vector.broadcast %cst_71 : f32 to vector<8x128xf32>
    %c0_i32 = arith.constant 0 : i32
    %c2_i32 = arith.constant 2 : i32
    %135 = arith.addi %c0_i32, %c2_i32 : i32
    %c1_i32 = arith.constant 1 : i32
    %136:2 = scf.for %arg18 = %c0_i32 to %135 step %c1_i32 iter_args(%arg19 = %134, %arg20 = %134) -> (vector<8x128xf32>, vector<8x128xf32>)  : i32 {
      %c8_i32 = arith.constant 8 : i32
      %137 = arith.muli %arg18, %c8_i32 : i32
      %138 = tpu.assume_multiple %137, 8 : i32
      %c0_73 = arith.constant 0 : index
      %139 = arith.index_cast %138 : i32 to index
      %c0_74 = arith.constant 0 : index
      %140 = vector.load %arg14[%c0_73, %139, %c0_74] : memref<2x16x128xf32, #tpu.memory_space<vmem>>, vector<1x8x128xf32>
      %141 = vector.shape_cast %140 : vector<1x8x128xf32> to vector<8x128xf32>
      %c1_75 = arith.constant 1 : index
      %142 = arith.index_cast %138 : i32 to index
      %c0_76 = arith.constant 0 : index
      %143 = vector.load %arg14[%c1_75, %142, %c0_76] : memref<2x16x128xf32, #tpu.memory_space<vmem>>, vector<1x8x128xf32>
      %144 = vector.shape_cast %143 : vector<1x8x128xf32> to vector<8x128xf32>
      %c0_77 = arith.constant 0 : index
      %145 = arith.index_cast %138 : i32 to index
      %c0_78 = arith.constant 0 : index
      %146 = vector.load %arg13[%c0_77, %145, %c0_78] : memref<2x16x128xf32, #tpu.memory_space<vmem>>, vector<1x8x128xf32>
      %147 = vector.shape_cast %146 : vector<1x8x128xf32> to vector<8x128xf32>
      %c1_79 = arith.constant 1 : index
      %148 = arith.index_cast %138 : i32 to index
      %c0_80 = arith.constant 0 : index
      %149 = vector.load %arg13[%c1_79, %148, %c0_80] : memref<2x16x128xf32, #tpu.memory_space<vmem>>, vector<1x8x128xf32>
      %150 = vector.shape_cast %149 : vector<1x8x128xf32> to vector<8x128xf32>
      %c0_81 = arith.constant 0 : index
      %151 = arith.index_cast %138 : i32 to index
      %c0_82 = arith.constant 0 : index
      %152 = vector.load %arg15[%c0_81, %151, %c0_82] : memref<2x16x8xf32, #tpu.memory_space<vmem>>, vector<1x8x8xf32>
      %153 = vector.shape_cast %152 : vector<1x8x8xf32> to vector<8x8xf32>
      %c1_83 = arith.constant 1 : index
      %154 = arith.index_cast %138 : i32 to index
      %c0_84 = arith.constant 0 : index
      %155 = vector.load %arg15[%c1_83, %154, %c0_84] : memref<2x16x8xf32, #tpu.memory_space<vmem>>, vector<1x8x8xf32>
      %156 = vector.shape_cast %155 : vector<1x8x8xf32> to vector<8x8xf32>
      %c0_85 = arith.constant 0 : index
      %157 = arith.index_cast %138 : i32 to index
      %c0_86 = arith.constant 0 : index
      %158 = vector.load %arg16[%c0_85, %157, %c0_86] : memref<2x16x8xf32, #tpu.memory_space<vmem>>, vector<1x8x8xf32>
      %159 = vector.shape_cast %158 : vector<1x8x8xf32> to vector<8x8xf32>
      %c1_87 = arith.constant 1 : index
      %160 = arith.index_cast %138 : i32 to index
      %c0_88 = arith.constant 0 : index
      %161 = vector.load %arg16[%c1_87, %160, %c0_88] : memref<2x16x8xf32, #tpu.memory_space<vmem>>, vector<1x8x8xf32>
      %162 = vector.shape_cast %161 : vector<1x8x8xf32> to vector<8x8xf32>
      %163 = arith.mulf %141, %147 : vector<8x128xf32>
      %164 = arith.mulf %144, %150 : vector<8x128xf32>
      %165 = vector.extract_strided_slice %141 {offsets = [0, 0], sizes = [1, 128], strides = [1, 1]} : vector<8x128xf32> to vector<1x128xf32>
      %166 = vector.broadcast %165 : vector<1x128xf32> to vector<8x128xf32>
      %167 = arith.mulf %166, %131 : vector<8x128xf32>
      %168 = math.exp %167 : vector<8x128xf32>
      %169 = vector.extract_strided_slice %144 {offsets = [0, 0], sizes = [1, 128], strides = [1, 1]} : vector<8x128xf32> to vector<1x128xf32>
      %170 = vector.broadcast %169 : vector<1x128xf32> to vector<8x128xf32>
      %171 = arith.mulf %170, %131 : vector<8x128xf32>
      %172 = math.exp %171 : vector<8x128xf32>
      %173 = vector.extract_strided_slice %153 {offsets = [0, 0], sizes = [1, 8], strides = [1, 1]} : vector<8x8xf32> to vector<1x8xf32>
      %174 = vector.shape_cast %173 : vector<1x8xf32> to vector<8x1xf32>
      %175 = vector.extract_strided_slice %163 {offsets = [0, 0], sizes = [1, 128], strides = [1, 1]} : vector<8x128xf32> to vector<1x128xf32>
      %176 = vector.broadcast %174 : vector<8x1xf32> to vector<8x128xf32>
      %177 = vector.broadcast %175 : vector<1x128xf32> to vector<8x128xf32>
      %178 = arith.mulf %176, %177 : vector<8x128xf32>
      %179 = vector.extract_strided_slice %156 {offsets = [0, 0], sizes = [1, 8], strides = [1, 1]} : vector<8x8xf32> to vector<1x8xf32>
      %180 = vector.shape_cast %179 : vector<1x8xf32> to vector<8x1xf32>
      %181 = vector.extract_strided_slice %164 {offsets = [0, 0], sizes = [1, 128], strides = [1, 1]} : vector<8x128xf32> to vector<1x128xf32>
      %182 = vector.broadcast %180 : vector<8x1xf32> to vector<8x128xf32>
      %183 = vector.broadcast %181 : vector<1x128xf32> to vector<8x128xf32>
      %184 = arith.mulf %182, %183 : vector<8x128xf32>
      %185 = vector.extract_strided_slice %159 {offsets = [0, 0], sizes = [1, 8], strides = [1, 1]} : vector<8x8xf32> to vector<1x8xf32>
      %186 = vector.shape_cast %185 : vector<1x8xf32> to vector<8x1xf32>
      %187 = vector.extract_strided_slice %162 {offsets = [0, 0], sizes = [1, 8], strides = [1, 1]} : vector<8x8xf32> to vector<1x8xf32>
      %188 = vector.shape_cast %187 : vector<1x8xf32> to vector<8x1xf32>
      %189 = vector.extract_strided_slice %141 {offsets = [1, 0], sizes = [1, 128], strides = [1, 1]} : vector<8x128xf32> to vector<1x128xf32>
      %190 = vector.broadcast %189 : vector<1x128xf32> to vector<8x128xf32>
      %191 = arith.mulf %190, %131 : vector<8x128xf32>
      %192 = math.exp %191 : vector<8x128xf32>
      %193 = vector.extract_strided_slice %144 {offsets = [1, 0], sizes = [1, 128], strides = [1, 1]} : vector<8x128xf32> to vector<1x128xf32>
      %194 = vector.broadcast %193 : vector<1x128xf32> to vector<8x128xf32>
      %195 = arith.mulf %194, %131 : vector<8x128xf32>
      %196 = math.exp %195 : vector<8x128xf32>
      %197 = vector.extract_strided_slice %153 {offsets = [1, 0], sizes = [1, 8], strides = [1, 1]} : vector<8x8xf32> to vector<1x8xf32>
      %198 = vector.shape_cast %197 : vector<1x8xf32> to vector<8x1xf32>
      %199 = vector.extract_strided_slice %163 {offsets = [1, 0], sizes = [1, 128], strides = [1, 1]} : vector<8x128xf32> to vector<1x128xf32>
      %200 = vector.broadcast %198 : vector<8x1xf32> to vector<8x128xf32>
      %201 = vector.broadcast %199 : vector<1x128xf32> to vector<8x128xf32>
      %202 = arith.mulf %200, %201 : vector<8x128xf32>
      %203 = vector.extract_strided_slice %156 {offsets = [1, 0], sizes = [1, 8], strides = [1, 1]} : vector<8x8xf32> to vector<1x8xf32>
      %204 = vector.shape_cast %203 : vector<1x8xf32> to vector<8x1xf32>
      %205 = vector.extract_strided_slice %164 {offsets = [1, 0], sizes = [1, 128], strides = [1, 1]} : vector<8x128xf32> to vector<1x128xf32>
      %206 = vector.broadcast %204 : vector<8x1xf32> to vector<8x128xf32>
      %207 = vector.broadcast %205 : vector<1x128xf32> to vector<8x128xf32>
      %208 = arith.mulf %206, %207 : vector<8x128xf32>
      %209 = vector.extract_strided_slice %159 {offsets = [1, 0], sizes = [1, 8], strides = [1, 1]} : vector<8x8xf32> to vector<1x8xf32>
      %210 = vector.shape_cast %209 : vector<1x8xf32> to vector<8x1xf32>
      %211 = vector.extract_strided_slice %162 {offsets = [1, 0], sizes = [1, 8], strides = [1, 1]} : vector<8x8xf32> to vector<1x8xf32>
      %212 = vector.shape_cast %211 : vector<1x8xf32> to vector<8x1xf32>
      %213 = vector.extract_strided_slice %141 {offsets = [2, 0], sizes = [1, 128], strides = [1, 1]} : vector<8x128xf32> to vector<1x128xf32>
      %214 = vector.broadcast %213 : vector<1x128xf32> to vector<8x128xf32>
      %215 = arith.mulf %214, %131 : vector<8x128xf32>
      %216 = math.exp %215 : vector<8x128xf32>
      %217 = vector.extract_strided_slice %144 {offsets = [2, 0], sizes = [1, 128], strides = [1, 1]} : vector<8x128xf32> to vector<1x128xf32>
      %218 = vector.broadcast %217 : vector<1x128xf32> to vector<8x128xf32>
      %219 = arith.mulf %218, %131 : vector<8x128xf32>
      %220 = math.exp %219 : vector<8x128xf32>
      %221 = vector.extract_strided_slice %153 {offsets = [2, 0], sizes = [1, 8], strides = [1, 1]} : vector<8x8xf32> to vector<1x8xf32>
      %222 = vector.shape_cast %221 : vector<1x8xf32> to vector<8x1xf32>
      %223 = vector.extract_strided_slice %163 {offsets = [2, 0], sizes = [1, 128], strides = [1, 1]} : vector<8x128xf32> to vector<1x128xf32>
      %224 = vector.broadcast %222 : vector<8x1xf32> to vector<8x128xf32>
      %225 = vector.broadcast %223 : vector<1x128xf32> to vector<8x128xf32>
      %226 = arith.mulf %224, %225 : vector<8x128xf32>
      %227 = vector.extract_strided_slice %156 {offsets = [2, 0], sizes = [1, 8], strides = [1, 1]} : vector<8x8xf32> to vector<1x8xf32>
      %228 = vector.shape_cast %227 : vector<1x8xf32> to vector<8x1xf32>
      %229 = vector.extract_strided_slice %164 {offsets = [2, 0], sizes = [1, 128], strides = [1, 1]} : vector<8x128xf32> to vector<1x128xf32>
      %230 = vector.broadcast %228 : vector<8x1xf32> to vector<8x128xf32>
      %231 = vector.broadcast %229 : vector<1x128xf32> to vector<8x128xf32>
      %232 = arith.mulf %230, %231 : vector<8x128xf32>
      %233 = vector.extract_strided_slice %159 {offsets = [2, 0], sizes = [1, 8], strides = [1, 1]} : vector<8x8xf32> to vector<1x8xf32>
      %234 = vector.shape_cast %233 : vector<1x8xf32> to vector<8x1xf32>
      %235 = vector.extract_strided_slice %162 {offsets = [2, 0], sizes = [1, 8], strides = [1, 1]} : vector<8x8xf32> to vector<1x8xf32>
      %236 = vector.shape_cast %235 : vector<1x8xf32> to vector<8x1xf32>
      %237 = vector.extract_strided_slice %141 {offsets = [3, 0], sizes = [1, 128], strides = [1, 1]} : vector<8x128xf32> to vector<1x128xf32>
      %238 = vector.broadcast %237 : vector<1x128xf32> to vector<8x128xf32>
      %239 = arith.mulf %238, %131 : vector<8x128xf32>
      %240 = math.exp %239 : vector<8x128xf32>
      %241 = vector.extract_strided_slice %144 {offsets = [3, 0], sizes = [1, 128], strides = [1, 1]} : vector<8x128xf32> to vector<1x128xf32>
      %242 = vector.broadcast %241 : vector<1x128xf32> to vector<8x128xf32>
      %243 = arith.mulf %242, %131 : vector<8x128xf32>
      %244 = math.exp %243 : vector<8x128xf32>
      %245 = vector.extract_strided_slice %153 {offsets = [3, 0], sizes = [1, 8], strides = [1, 1]} : vector<8x8xf32> to vector<1x8xf32>
      %246 = vector.shape_cast %245 : vector<1x8xf32> to vector<8x1xf32>
      %247 = vector.extract_strided_slice %163 {offsets = [3, 0], sizes = [1, 128], strides = [1, 1]} : vector<8x128xf32> to vector<1x128xf32>
      %248 = vector.broadcast %246 : vector<8x1xf32> to vector<8x128xf32>
      %249 = vector.broadcast %247 : vector<1x128xf32> to vector<8x128xf32>
      %250 = arith.mulf %248, %249 : vector<8x128xf32>
      %251 = vector.extract_strided_slice %156 {offsets = [3, 0], sizes = [1, 8], strides = [1, 1]} : vector<8x8xf32> to vector<1x8xf32>
      %252 = vector.shape_cast %251 : vector<1x8xf32> to vector<8x1xf32>
      %253 = vector.extract_strided_slice %164 {offsets = [3, 0], sizes = [1, 128], strides = [1, 1]} : vector<8x128xf32> to vector<1x128xf32>
      %254 = vector.broadcast %252 : vector<8x1xf32> to vector<8x128xf32>
      %255 = vector.broadcast %253 : vector<1x128xf32> to vector<8x128xf32>
      %256 = arith.mulf %254, %255 : vector<8x128xf32>
      %257 = vector.extract_strided_slice %159 {offsets = [3, 0], sizes = [1, 8], strides = [1, 1]} : vector<8x8xf32> to vector<1x8xf32>
      %258 = vector.shape_cast %257 : vector<1x8xf32> to vector<8x1xf32>
      %259 = vector.extract_strided_slice %162 {offsets = [3, 0], sizes = [1, 8], strides = [1, 1]} : vector<8x8xf32> to vector<1x8xf32>
      %260 = vector.shape_cast %259 : vector<1x8xf32> to vector<8x1xf32>
      %261 = vector.extract_strided_slice %141 {offsets = [4, 0], sizes = [1, 128], strides = [1, 1]} : vector<8x128xf32> to vector<1x128xf32>
      %262 = vector.broadcast %261 : vector<1x128xf32> to vector<8x128xf32>
      %263 = arith.mulf %262, %131 : vector<8x128xf32>
      %264 = math.exp %263 : vector<8x128xf32>
      %265 = vector.extract_strided_slice %144 {offsets = [4, 0], sizes = [1, 128], strides = [1, 1]} : vector<8x128xf32> to vector<1x128xf32>
      %266 = vector.broadcast %265 : vector<1x128xf32> to vector<8x128xf32>
      %267 = arith.mulf %266, %131 : vector<8x128xf32>
      %268 = math.exp %267 : vector<8x128xf32>
      %269 = vector.extract_strided_slice %153 {offsets = [4, 0], sizes = [1, 8], strides = [1, 1]} : vector<8x8xf32> to vector<1x8xf32>
      %270 = vector.shape_cast %269 : vector<1x8xf32> to vector<8x1xf32>
      %271 = vector.extract_strided_slice %163 {offsets = [4, 0], sizes = [1, 128], strides = [1, 1]} : vector<8x128xf32> to vector<1x128xf32>
      %272 = vector.broadcast %270 : vector<8x1xf32> to vector<8x128xf32>
      %273 = vector.broadcast %271 : vector<1x128xf32> to vector<8x128xf32>
      %274 = arith.mulf %272, %273 : vector<8x128xf32>
      %275 = vector.extract_strided_slice %156 {offsets = [4, 0], sizes = [1, 8], strides = [1, 1]} : vector<8x8xf32> to vector<1x8xf32>
      %276 = vector.shape_cast %275 : vector<1x8xf32> to vector<8x1xf32>
      %277 = vector.extract_strided_slice %164 {offsets = [4, 0], sizes = [1, 128], strides = [1, 1]} : vector<8x128xf32> to vector<1x128xf32>
      %278 = vector.broadcast %276 : vector<8x1xf32> to vector<8x128xf32>
      %279 = vector.broadcast %277 : vector<1x128xf32> to vector<8x128xf32>
      %280 = arith.mulf %278, %279 : vector<8x128xf32>
      %281 = vector.extract_strided_slice %159 {offsets = [4, 0], sizes = [1, 8], strides = [1, 1]} : vector<8x8xf32> to vector<1x8xf32>
      %282 = vector.shape_cast %281 : vector<1x8xf32> to vector<8x1xf32>
      %283 = vector.extract_strided_slice %162 {offsets = [4, 0], sizes = [1, 8], strides = [1, 1]} : vector<8x8xf32> to vector<1x8xf32>
      %284 = vector.shape_cast %283 : vector<1x8xf32> to vector<8x1xf32>
      %285 = vector.extract_strided_slice %141 {offsets = [5, 0], sizes = [1, 128], strides = [1, 1]} : vector<8x128xf32> to vector<1x128xf32>
      %286 = vector.broadcast %285 : vector<1x128xf32> to vector<8x128xf32>
      %287 = arith.mulf %286, %131 : vector<8x128xf32>
      %288 = math.exp %287 : vector<8x128xf32>
      %289 = vector.extract_strided_slice %144 {offsets = [5, 0], sizes = [1, 128], strides = [1, 1]} : vector<8x128xf32> to vector<1x128xf32>
      %290 = vector.broadcast %289 : vector<1x128xf32> to vector<8x128xf32>
      %291 = arith.mulf %290, %131 : vector<8x128xf32>
      %292 = math.exp %291 : vector<8x128xf32>
      %293 = vector.extract_strided_slice %153 {offsets = [5, 0], sizes = [1, 8], strides = [1, 1]} : vector<8x8xf32> to vector<1x8xf32>
      %294 = vector.shape_cast %293 : vector<1x8xf32> to vector<8x1xf32>
      %295 = vector.extract_strided_slice %163 {offsets = [5, 0], sizes = [1, 128], strides = [1, 1]} : vector<8x128xf32> to vector<1x128xf32>
      %296 = vector.broadcast %294 : vector<8x1xf32> to vector<8x128xf32>
      %297 = vector.broadcast %295 : vector<1x128xf32> to vector<8x128xf32>
      %298 = arith.mulf %296, %297 : vector<8x128xf32>
      %299 = vector.extract_strided_slice %156 {offsets = [5, 0], sizes = [1, 8], strides = [1, 1]} : vector<8x8xf32> to vector<1x8xf32>
      %300 = vector.shape_cast %299 : vector<1x8xf32> to vector<8x1xf32>
      %301 = vector.extract_strided_slice %164 {offsets = [5, 0], sizes = [1, 128], strides = [1, 1]} : vector<8x128xf32> to vector<1x128xf32>
      %302 = vector.broadcast %300 : vector<8x1xf32> to vector<8x128xf32>
      %303 = vector.broadcast %301 : vector<1x128xf32> to vector<8x128xf32>
      %304 = arith.mulf %302, %303 : vector<8x128xf32>
      %305 = vector.extract_strided_slice %159 {offsets = [5, 0], sizes = [1, 8], strides = [1, 1]} : vector<8x8xf32> to vector<1x8xf32>
      %306 = vector.shape_cast %305 : vector<1x8xf32> to vector<8x1xf32>
      %307 = vector.extract_strided_slice %162 {offsets = [5, 0], sizes = [1, 8], strides = [1, 1]} : vector<8x8xf32> to vector<1x8xf32>
      %308 = vector.shape_cast %307 : vector<1x8xf32> to vector<8x1xf32>
      %309 = vector.extract_strided_slice %141 {offsets = [6, 0], sizes = [1, 128], strides = [1, 1]} : vector<8x128xf32> to vector<1x128xf32>
      %310 = vector.broadcast %309 : vector<1x128xf32> to vector<8x128xf32>
      %311 = arith.mulf %310, %131 : vector<8x128xf32>
      %312 = math.exp %311 : vector<8x128xf32>
      %313 = vector.extract_strided_slice %144 {offsets = [6, 0], sizes = [1, 128], strides = [1, 1]} : vector<8x128xf32> to vector<1x128xf32>
      %314 = vector.broadcast %313 : vector<1x128xf32> to vector<8x128xf32>
      %315 = arith.mulf %314, %131 : vector<8x128xf32>
      %316 = math.exp %315 : vector<8x128xf32>
      %317 = vector.extract_strided_slice %153 {offsets = [6, 0], sizes = [1, 8], strides = [1, 1]} : vector<8x8xf32> to vector<1x8xf32>
      %318 = vector.shape_cast %317 : vector<1x8xf32> to vector<8x1xf32>
      %319 = vector.extract_strided_slice %163 {offsets = [6, 0], sizes = [1, 128], strides = [1, 1]} : vector<8x128xf32> to vector<1x128xf32>
      %320 = vector.broadcast %318 : vector<8x1xf32> to vector<8x128xf32>
      %321 = vector.broadcast %319 : vector<1x128xf32> to vector<8x128xf32>
      %322 = arith.mulf %320, %321 : vector<8x128xf32>
      %323 = vector.extract_strided_slice %156 {offsets = [6, 0], sizes = [1, 8], strides = [1, 1]} : vector<8x8xf32> to vector<1x8xf32>
      %324 = vector.shape_cast %323 : vector<1x8xf32> to vector<8x1xf32>
      %325 = vector.extract_strided_slice %164 {offsets = [6, 0], sizes = [1, 128], strides = [1, 1]} : vector<8x128xf32> to vector<1x128xf32>
      %326 = vector.broadcast %324 : vector<8x1xf32> to vector<8x128xf32>
      %327 = vector.broadcast %325 : vector<1x128xf32> to vector<8x128xf32>
      %328 = arith.mulf %326, %327 : vector<8x128xf32>
      %329 = vector.extract_strided_slice %159 {offsets = [6, 0], sizes = [1, 8], strides = [1, 1]} : vector<8x8xf32> to vector<1x8xf32>
      %330 = vector.shape_cast %329 : vector<1x8xf32> to vector<8x1xf32>
      %331 = vector.extract_strided_slice %162 {offsets = [6, 0], sizes = [1, 8], strides = [1, 1]} : vector<8x8xf32> to vector<1x8xf32>
      %332 = vector.shape_cast %331 : vector<1x8xf32> to vector<8x1xf32>
      %333 = vector.extract_strided_slice %141 {offsets = [7, 0], sizes = [1, 128], strides = [1, 1]} : vector<8x128xf32> to vector<1x128xf32>
      %334 = vector.broadcast %333 : vector<1x128xf32> to vector<8x128xf32>
      %335 = arith.mulf %334, %131 : vector<8x128xf32>
      %336 = math.exp %335 : vector<8x128xf32>
      %337 = vector.extract_strided_slice %144 {offsets = [7, 0], sizes = [1, 128], strides = [1, 1]} : vector<8x128xf32> to vector<1x128xf32>
      %338 = vector.broadcast %337 : vector<1x128xf32> to vector<8x128xf32>
      %339 = arith.mulf %338, %131 : vector<8x128xf32>
      %340 = math.exp %339 : vector<8x128xf32>
      %341 = vector.extract_strided_slice %153 {offsets = [7, 0], sizes = [1, 8], strides = [1, 1]} : vector<8x8xf32> to vector<1x8xf32>
      %342 = vector.shape_cast %341 : vector<1x8xf32> to vector<8x1xf32>
      %343 = vector.extract_strided_slice %163 {offsets = [7, 0], sizes = [1, 128], strides = [1, 1]} : vector<8x128xf32> to vector<1x128xf32>
      %344 = vector.broadcast %342 : vector<8x1xf32> to vector<8x128xf32>
      %345 = vector.broadcast %343 : vector<1x128xf32> to vector<8x128xf32>
      %346 = arith.mulf %344, %345 : vector<8x128xf32>
      %347 = vector.extract_strided_slice %156 {offsets = [7, 0], sizes = [1, 8], strides = [1, 1]} : vector<8x8xf32> to vector<1x8xf32>
      %348 = vector.shape_cast %347 : vector<1x8xf32> to vector<8x1xf32>
      %349 = vector.extract_strided_slice %164 {offsets = [7, 0], sizes = [1, 128], strides = [1, 1]} : vector<8x128xf32> to vector<1x128xf32>
      %350 = vector.broadcast %348 : vector<8x1xf32> to vector<8x128xf32>
      %351 = vector.broadcast %349 : vector<1x128xf32> to vector<8x128xf32>
      %352 = arith.mulf %350, %351 : vector<8x128xf32>
      %353 = vector.extract_strided_slice %159 {offsets = [7, 0], sizes = [1, 8], strides = [1, 1]} : vector<8x8xf32> to vector<1x8xf32>
      %354 = vector.shape_cast %353 : vector<1x8xf32> to vector<8x1xf32>
      %355 = vector.extract_strided_slice %162 {offsets = [7, 0], sizes = [1, 8], strides = [1, 1]} : vector<8x8xf32> to vector<1x8xf32>
      %356 = vector.shape_cast %355 : vector<1x8xf32> to vector<8x1xf32>
      %357 = arith.mulf %168, %arg19 : vector<8x128xf32>
      %358 = arith.addf %357, %178 : vector<8x128xf32>
      %359 = arith.mulf %172, %arg20 : vector<8x128xf32>
      %360 = arith.addf %359, %184 : vector<8x128xf32>
      %361 = vector.broadcast %186 : vector<8x1xf32> to vector<8x128xf32>
      %362 = arith.mulf %358, %361 : vector<8x128xf32>
      %363 = vector.broadcast %188 : vector<8x1xf32> to vector<8x128xf32>
      %364 = arith.mulf %360, %363 : vector<8x128xf32>
      %365 = arith.addf %362, %364 : vector<8x128xf32>
      %cst_89 = arith.constant dense<0.000000e+00> : vector<128xf32>
      %366 = vector.multi_reduction <add>, %365, %cst_89 [0] : vector<8x128xf32> to vector<128xf32>
      %367 = vector.shape_cast %366 : vector<128xf32> to vector<1x128xf32>
      %368 = arith.mulf %192, %358 : vector<8x128xf32>
      %369 = arith.addf %368, %202 : vector<8x128xf32>
      %370 = arith.mulf %196, %360 : vector<8x128xf32>
      %371 = arith.addf %370, %208 : vector<8x128xf32>
      %372 = vector.broadcast %210 : vector<8x1xf32> to vector<8x128xf32>
      %373 = arith.mulf %369, %372 : vector<8x128xf32>
      %374 = vector.broadcast %212 : vector<8x1xf32> to vector<8x128xf32>
      %375 = arith.mulf %371, %374 : vector<8x128xf32>
      %376 = arith.addf %373, %375 : vector<8x128xf32>
      %cst_90 = arith.constant dense<0.000000e+00> : vector<128xf32>
      %377 = vector.multi_reduction <add>, %376, %cst_90 [0] : vector<8x128xf32> to vector<128xf32>
      %378 = vector.shape_cast %377 : vector<128xf32> to vector<1x128xf32>
      %379 = arith.mulf %216, %369 : vector<8x128xf32>
      %380 = arith.addf %379, %226 : vector<8x128xf32>
      %381 = arith.mulf %220, %371 : vector<8x128xf32>
      %382 = arith.addf %381, %232 : vector<8x128xf32>
      %383 = vector.broadcast %234 : vector<8x1xf32> to vector<8x128xf32>
      %384 = arith.mulf %380, %383 : vector<8x128xf32>
      %385 = vector.broadcast %236 : vector<8x1xf32> to vector<8x128xf32>
      %386 = arith.mulf %382, %385 : vector<8x128xf32>
      %387 = arith.addf %384, %386 : vector<8x128xf32>
      %cst_91 = arith.constant dense<0.000000e+00> : vector<128xf32>
      %388 = vector.multi_reduction <add>, %387, %cst_91 [0] : vector<8x128xf32> to vector<128xf32>
      %389 = vector.shape_cast %388 : vector<128xf32> to vector<1x128xf32>
      %390 = arith.mulf %240, %380 : vector<8x128xf32>
      %391 = arith.addf %390, %250 : vector<8x128xf32>
      %392 = arith.mulf %244, %382 : vector<8x128xf32>
      %393 = arith.addf %392, %256 : vector<8x128xf32>
      %394 = vector.broadcast %258 : vector<8x1xf32> to vector<8x128xf32>
      %395 = arith.mulf %391, %394 : vector<8x128xf32>
      %396 = vector.broadcast %260 : vector<8x1xf32> to vector<8x128xf32>
      %397 = arith.mulf %393, %396 : vector<8x128xf32>
      %398 = arith.addf %395, %397 : vector<8x128xf32>
      %cst_92 = arith.constant dense<0.000000e+00> : vector<128xf32>
      %399 = vector.multi_reduction <add>, %398, %cst_92 [0] : vector<8x128xf32> to vector<128xf32>
      %400 = vector.shape_cast %399 : vector<128xf32> to vector<1x128xf32>
      %401 = arith.mulf %264, %391 : vector<8x128xf32>
      %402 = arith.addf %401, %274 : vector<8x128xf32>
      %403 = arith.mulf %268, %393 : vector<8x128xf32>
      %404 = arith.addf %403, %280 : vector<8x128xf32>
      %405 = vector.broadcast %282 : vector<8x1xf32> to vector<8x128xf32>
      %406 = arith.mulf %402, %405 : vector<8x128xf32>
      %407 = vector.broadcast %284 : vector<8x1xf32> to vector<8x128xf32>
      %408 = arith.mulf %404, %407 : vector<8x128xf32>
      %409 = arith.addf %406, %408 : vector<8x128xf32>
      %cst_93 = arith.constant dense<0.000000e+00> : vector<128xf32>
      %410 = vector.multi_reduction <add>, %409, %cst_93 [0] : vector<8x128xf32> to vector<128xf32>
      %411 = vector.shape_cast %410 : vector<128xf32> to vector<1x128xf32>
      %412 = arith.mulf %288, %402 : vector<8x128xf32>
      %413 = arith.addf %412, %298 : vector<8x128xf32>
      %414 = arith.mulf %292, %404 : vector<8x128xf32>
      %415 = arith.addf %414, %304 : vector<8x128xf32>
      %416 = vector.broadcast %306 : vector<8x1xf32> to vector<8x128xf32>
      %417 = arith.mulf %413, %416 : vector<8x128xf32>
      %418 = vector.broadcast %308 : vector<8x1xf32> to vector<8x128xf32>
      %419 = arith.mulf %415, %418 : vector<8x128xf32>
      %420 = arith.addf %417, %419 : vector<8x128xf32>
      %cst_94 = arith.constant dense<0.000000e+00> : vector<128xf32>
      %421 = vector.multi_reduction <add>, %420, %cst_94 [0] : vector<8x128xf32> to vector<128xf32>
      %422 = vector.shape_cast %421 : vector<128xf32> to vector<1x128xf32>
      %423 = arith.mulf %312, %413 : vector<8x128xf32>
      %424 = arith.addf %423, %322 : vector<8x128xf32>
      %425 = arith.mulf %316, %415 : vector<8x128xf32>
      %426 = arith.addf %425, %328 : vector<8x128xf32>
      %427 = vector.broadcast %330 : vector<8x1xf32> to vector<8x128xf32>
      %428 = arith.mulf %424, %427 : vector<8x128xf32>
      %429 = vector.broadcast %332 : vector<8x1xf32> to vector<8x128xf32>
      %430 = arith.mulf %426, %429 : vector<8x128xf32>
      %431 = arith.addf %428, %430 : vector<8x128xf32>
      %cst_95 = arith.constant dense<0.000000e+00> : vector<128xf32>
      %432 = vector.multi_reduction <add>, %431, %cst_95 [0] : vector<8x128xf32> to vector<128xf32>
      %433 = vector.shape_cast %432 : vector<128xf32> to vector<1x128xf32>
      %434 = arith.mulf %336, %424 : vector<8x128xf32>
      %435 = arith.addf %434, %346 : vector<8x128xf32>
      %436 = arith.mulf %340, %426 : vector<8x128xf32>
      %437 = arith.addf %436, %352 : vector<8x128xf32>
      %438 = vector.broadcast %354 : vector<8x1xf32> to vector<8x128xf32>
      %439 = arith.mulf %435, %438 : vector<8x128xf32>
      %440 = vector.broadcast %356 : vector<8x1xf32> to vector<8x128xf32>
      %441 = arith.mulf %437, %440 : vector<8x128xf32>
      %442 = arith.addf %439, %441 : vector<8x128xf32>
      %cst_96 = arith.constant dense<0.000000e+00> : vector<128xf32>
      %443 = vector.multi_reduction <add>, %442, %cst_96 [0] : vector<8x128xf32> to vector<128xf32>
      %444 = vector.shape_cast %443 : vector<128xf32> to vector<1x128xf32>
      %445 = tpu.concatenate %367, %378, %389, %400, %411, %422, %433, %444 in 0 : vector<1x128xf32>, vector<1x128xf32>, vector<1x128xf32>, vector<1x128xf32>, vector<1x128xf32>, vector<1x128xf32>, vector<1x128xf32>, vector<1x128xf32> -> vector<8x128xf32>
      %446 = arith.addf %147, %150 : vector<8x128xf32>
      %447 = vector.shape_cast %133 : vector<128xf32> to vector<1x128xf32>
      %448 = vector.broadcast %447 : vector<1x128xf32> to vector<8x128xf32>
      %449 = arith.mulf %446, %448 : vector<8x128xf32>
      %450 = arith.addf %445, %449 : vector<8x128xf32>
      %451 = arith.index_cast %138 : i32 to index
      %c0_97 = arith.constant 0 : index
      %452 = vector.load %arg17[%451, %c0_97] : memref<16x128xf32, #tpu.memory_space<vmem>>, vector<8x128xf32>
      %c0_98 = arith.constant 0 : index
      %453 = arith.index_cast %138 : i32 to index
      %c0_99 = arith.constant 0 : index
      %454 = vector.load %arg1[%c0_98, %453, %c0_99] : memref<1x16x128xf32, #tpu.memory_space<vmem>>, vector<1x8x128xf32>
      %455 = vector.shape_cast %454 : vector<1x8x128xf32> to vector<8x128xf32>
      %456 = arith.mulf %450, %452 : vector<8x128xf32>
      %457 = arith.addf %456, %455 : vector<8x128xf32>
      %c0_100 = arith.constant 0 : index
      %458 = arith.index_cast %138 : i32 to index
      %c0_101 = arith.constant 0 : index
      %459 = vector.load %arg12[%c0_100, %458, %c0_101] : memref<1x16x128xf32, #tpu.memory_space<vmem>>, vector<1x8x128xf32>
      %460 = vector.shape_cast %459 : vector<1x8x128xf32> to vector<8x128xf32>
      %461 = vector.shape_cast %457 : vector<8x128xf32> to vector<1x8x128xf32>
      tpu.vector_store %arg12[%c0_100, %458, %c0_101], %461 {strides = array<i32>} : memref<1x16x128xf32, #tpu.memory_space<vmem>>, vector<1x8x128xf32>,
      scf.yield %435, %437 : vector<8x128xf32>, vector<8x128xf32>
    }
    %c2_i32_72 = arith.constant 2 : i32
    return
  }
  func.func @transform_0(%arg0: i32) -> (i32, i32, i32) {
    %c0_i32 = arith.constant 0 : i32
    %c0_i32_0 = arith.constant 0 : i32
    %c0_i32_1 = arith.constant 0 : i32
    return %arg0, %c0_i32, %c0_i32_0 : i32, i32, i32
  }
  func.func @transform_1(%arg0: i32) -> (i32, i32) {
    %c0_i32 = arith.constant 0 : i32
    %c0_i32_0 = arith.constant 0 : i32
    %c0_i32_1 = arith.constant 0 : i32
    return %c0_i32, %c0_i32_0 : i32, i32
  }
  func.func @transform_2(%arg0: i32) -> (i32, i32) {
    %c0_i32 = arith.constant 0 : i32
    %c0_i32_0 = arith.constant 0 : i32
    %c0_i32_1 = arith.constant 0 : i32
    return %c0_i32, %c0_i32_0 : i32, i32
  }
  func.func @transform_3(%arg0: i32) -> (i32, i32) {
    %c0_i32 = arith.constant 0 : i32
    %c0_i32_0 = arith.constant 0 : i32
    %c0_i32_1 = arith.constant 0 : i32
    return %c0_i32, %c0_i32_0 : i32, i32
  }
  func.func @transform_4(%arg0: i32) -> (i32, i32) {
    %c0_i32 = arith.constant 0 : i32
    %c0_i32_0 = arith.constant 0 : i32
    %c0_i32_1 = arith.constant 0 : i32
    return %c0_i32, %c0_i32_0 : i32, i32
  }
  func.func @transform_5(%arg0: i32) -> (i32, i32) {
    %c0_i32 = arith.constant 0 : i32
    %c0_i32_0 = arith.constant 0 : i32
    %c0_i32_1 = arith.constant 0 : i32
    return %c0_i32, %c0_i32_0 : i32, i32
  }
  func.func @transform_6(%arg0: i32) -> (i32, i32) {
    %c0_i32 = arith.constant 0 : i32
    %c0_i32_0 = arith.constant 0 : i32
    %c0_i32_1 = arith.constant 0 : i32
    return %c0_i32, %c0_i32_0 : i32, i32
  }
  func.func @transform_7(%arg0: i32) -> (i32, i32) {
    %c0_i32 = arith.constant 0 : i32
    %c0_i32_0 = arith.constant 0 : i32
    %c0_i32_1 = arith.constant 0 : i32
    return %c0_i32, %c0_i32_0 : i32, i32
  }
  func.func @transform_8(%arg0: i32) -> (i32, i32) {
    %c0_i32 = arith.constant 0 : i32
    %c0_i32_0 = arith.constant 0 : i32
    %c0_i32_1 = arith.constant 0 : i32
    return %c0_i32, %c0_i32_0 : i32, i32
  }
  func.func @transform_9(%arg0: i32) -> (i32, i32) {
    %c0_i32 = arith.constant 0 : i32
    %c0_i32_0 = arith.constant 0 : i32
    %c0_i32_1 = arith.constant 0 : i32
    return %c0_i32, %c0_i32_0 : i32, i32
  }
  func.func @transform_10(%arg0: i32) -> (i32, i32) {
    %c0_i32 = arith.constant 0 : i32
    %c0_i32_0 = arith.constant 0 : i32
    %c0_i32_1 = arith.constant 0 : i32
    return %c0_i32, %c0_i32_0 : i32, i32
  }
  func.func @transform_11(%arg0: i32) -> (i32, i32, i32) {
    %c0_i32 = arith.constant 0 : i32
    %c0_i32_0 = arith.constant 0 : i32
    %c0_i32_1 = arith.constant 0 : i32
    return %arg0, %c0_i32, %c0_i32_0 : i32, i32, i32
  }
}

</mosaic_0001>

<llo_original>
// kernel: tpu_custom_call.1
$region0: #{tpu_custom_call.1}
  #allocation0 [shape = 'u32[]', space=smem, size = 0x4, offset = 0x4, fixed_abs, tag = 'smem constant byte address 0x4 - core index']
  #allocation1 [shape = 'u32[144,128]{1,0:T(1,128)}', space=vmem, size = 0x12000, scoped, tag = 'internal scratch']
  #allocation2 [shape = 'f32[2,16,128]{2,1,0:T(8,128)}', space=vmem, size = 0x4000, scoped, tag = 'scratch operand']
  #allocation3 [shape = 'f32[2,16,128]{2,1,0:T(8,128)}', space=vmem, size = 0x4000, scoped, tag = 'scratch operand']
  #allocation4 [shape = 'f32[2,16,8]{2,1,0:T(8,128)}', space=vmem, size = 0x4000, scoped, tag = 'scratch operand']
  #allocation5 [shape = 'f32[2,16,8]{2,1,0:T(8,128)}', space=vmem, size = 0x4000, scoped, tag = 'scratch operand']
  #allocation6 [shape = 'f32[16,128]{1,0:T(8,128)}', space=vmem, size = 0x2000, scoped, tag = 'scratch operand']
  %s0 = inlined_call_operand.hbm [shape: f32[2,16,128], index: 0, kind: input, shape index: {}]
  %s1 = inlined_call_operand.vmem [shape: f32[1,128], index: 1, kind: input, shape index: {}]
  %s2 = inlined_call_operand.vmem [shape: f32[1,128], index: 2, kind: input, shape index: {}]
  %s3 = inlined_call_operand.vmem [shape: bf16[128,128], index: 3, kind: input, shape index: {}]
  %s4 = inlined_call_operand.vmem [shape: f32[1,128], index: 4, kind: input, shape index: {}]
  %s5 = inlined_call_operand.vmem [shape: bf16[128,256], index: 5, kind: input, shape index: {}]
  %s6 = inlined_call_operand.vmem [shape: f32[1,256], index: 6, kind: input, shape index: {}]
  %s7 = inlined_call_operand.vmem [shape: bf16[128,144], index: 7, kind: input, shape index: {}]
  %s8 = inlined_call_operand.vmem [shape: f32[1,128], index: 8, kind: input, shape index: {}]
  %s9 = inlined_call_operand.vmem [shape: f32[8,128], index: 9, kind: input, shape index: {}]
  %s10 = inlined_call_operand.vmem [shape: f32[1,128], index: 10, kind: input, shape index: {}]
  %s11 = inlined_call_operand.hbm [shape: f32[2,16,128], index: 11, kind: output, shape index: {}]
  %s12 = sld [smem:[#allocation0]]
  $region88: #{tpu_custom_call.1} parent=0
    _
  %s14 = ssub.s32 1, %s12
  %s15 = scalar_select 0, %s14, %s12
  $region1: #{tpu_custom_call.1} parent=0
    #allocation7 [shape = 'u8[16384]{0}', space=vmem, size = 0x4000, scoped, tag = 'input window, operand 0']
    #allocation8 [shape = 's32[2]{0}', space=sflag, size = 0x8, scoped, tag = 'scoped memory for tpu_custom_call.1']
    #allocation9 [shape = 's32[2]{0}', space=sflag, size = 0x8, scoped, tag = 'scoped memory for tpu_custom_call.1']
    #allocation10 [shape = 'u8[16384]{0}', space=vmem, size = 0x4000, scoped, tag = 'output window, operand 0']
    %16 = vsyncpa [#allocation8], 0
    %s17 = scalar_lea.sflag [#allocation8], 1
    %18 = vsyncpa %s17, 0
    %19 = vsyncpa [#allocation9], 0
    %s20 = scalar_lea.sflag [#allocation9], 1
    %21 = vsyncpa %s20, 0
    loop: start=0, step=1, limit=4
    $region2: #{tpu_custom_call.1} parent=1 // loop_pre_header
      _
    $region3: #{tpu_custom_call.1} parent=1 // loop_header
      %s23 = sphi 0, %s27
      %p24 = scmp.ge.s32.totalorder %s23, 4
      %s33 = sphi 0, %s35
      %s36 = sphi 0, %s33
      %s37 = sphi 0, %s36
      %s53 = sphi 0, %s37
      %s57 = sphi 0, %s57
      %s59 = sphi 0, %s57
      %s60 = sphi 0, %s59
      %s74 = sphi 0, %s60
      %s78 = sphi 0, %s78
      %s80 = sphi 0, %s78
      %s81 = sphi 0, %s80
      %s95 = sphi 0, %s81
      %s99 = sphi 0, %s99
      %s101 = sphi 0, %s99
      %s102 = sphi 0, %s101
      %s116 = sphi 0, %s102
      %s120 = sphi 0, %s120
      %s122 = sphi 0, %s120
      %s123 = sphi 0, %s122
      %s137 = sphi 0, %s123
      %s141 = sphi 0, %s141
      %s143 = sphi 0, %s141
      %s144 = sphi 0, %s143
      %s158 = sphi 0, %s144
      %s162 = sphi 0, %s162
      %s164 = sphi 0, %s162
      %s165 = sphi 0, %s164
      %s179 = sphi 0, %s165
      %s183 = sphi 0, %s183
      %s185 = sphi 0, %s183
      %s186 = sphi 0, %s185
      %s200 = sphi 0, %s186
      %s204 = sphi 0, %s204
      %s206 = sphi 0, %s204
      %s207 = sphi 0, %s206
      %s221 = sphi 0, %s207
      %s225 = sphi 0, %s225
      %s227 = sphi 0, %s225
      %s228 = sphi 0, %s227
      %s242 = sphi 0, %s228
      %s246 = sphi 0, %s246
      %s248 = sphi 0, %s246
      %s249 = sphi 0, %s248
      %s263 = sphi 0, %s249
      %s269 = sphi 0, %s271
      %s272 = sphi 0, %s269
      %s273 = sphi 0, %s272
      %s289 = sphi 0, %s273
    $region4: #{tpu_custom_call.1} parent=1 // loop_header_branch
      %26 = sbr.rel (%p24) target = $region8
    $region5: #{tpu_custom_call.1} parent=1 // loop_body
      %s28 = ssub.s32 %s23, 1
      %s29 = ssub.s32 %s23, 2
      %s30 = sadd.s32 %s23, 1
      %s31 = ssub.s32 %s23, %s30
      %p32 = scmp.eq.s32.totalorder %s31, 0
      %s34 = sadd.s32 %s33, 1
      %s35 = scalar_select %p32, %s33, %s34
      %p38 = pneg %p32
      %p39 = scmp.eq.s32.totalorder %s23, 1
      %p40 = por %p38, %p39
      %p41 = scmp.ne.s32.totalorder %s33, %s36
      %p42 = scmp.eq.s32.totalorder %s23, 0
      %p43 = por %p41, %p42
      %p44 = scmp.ne.s32.totalorder %s33, %s36
      %p45 = scmp.eq.s32.totalorder %s28, 1
      %p46 = por %p44, %p45
      %p47 = scmp.ne.s32.totalorder %s36, %s37
      %p48 = scmp.eq.s32.totalorder %s28, 0
      %p49 = por %p47, %p48
      %p50 = scmp.ne.s32.totalorder %s36, %s37
      %p51 = scmp.eq.s32.totalorder %s29, 1
      %p52 = por %p50, %p51
      %p54 = scmp.ne.s32.totalorder %s37, %s53
      %p55 = scmp.eq.s32.totalorder %s29, 0
      %p56 = por %p54, %p55
      %s58 = sadd.s32 %s57, 1
      %p61 = scmp.eq.s32.totalorder %s23, 1
      %p62 = scmp.ne.s32.totalorder %s57, %s59
      %p63 = scmp.eq.s32.totalorder %s23, 0
      %p64 = por %p62, %p63
      %p65 = scmp.ne.s32.totalorder %s57, %s59
      %p66 = scmp.eq.s32.totalorder %s28, 1
      %p67 = por %p65, %p66
      %p68 = scmp.ne.s32.totalorder %s59, %s60
      %p69 = scmp.eq.s32.totalorder %s28, 0
      %p70 = por %p68, %p69
      %p71 = scmp.ne.s32.totalorder %s59, %s60
      %p72 = scmp.eq.s32.totalorder %s29, 1
      %p73 = por %p71, %p72
      %p75 = scmp.ne.s32.totalorder %s60, %s74
      %p76 = scmp.eq.s32.totalorder %s29, 0
      %p77 = por %p75, %p76
      %s79 = sadd.s32 %s78, 1
      %p82 = scmp.eq.s32.totalorder %s23, 1
      %p83 = scmp.ne.s32.totalorder %s78, %s80
      %p84 = scmp.eq.s32.totalorder %s23, 0
      %p85 = por %p83, %p84
      %p86 = scmp.ne.s32.totalorder %s78, %s80
      %p87 = scmp.eq.s32.totalorder %s28, 1
      %p88 = por %p86, %p87
      %p89 = scmp.ne.s32.totalorder %s80, %s81
      %p90 = scmp.eq.s32.totalorder %s28, 0
      %p91 = por %p89, %p90
      %p92 = scmp.ne.s32.totalorder %s80, %s81
      %p93 = scmp.eq.s32.totalorder %s29, 1
      %p94 = por %p92, %p93
      %p96 = scmp.ne.s32.totalorder %s81, %s95
      %p97 = scmp.eq.s32.totalorder %s29, 0
      %p98 = por %p96, %p97
      %s100 = sadd.s32 %s99, 1
      %p103 = scmp.eq.s32.totalorder %s23, 1
      %p104 = scmp.ne.s32.totalorder %s99, %s101
      %p105 = scmp.eq.s32.totalorder %s23, 0
      %p106 = por %p104, %p105
      %p107 = scmp.ne.s32.totalorder %s99, %s101
      %p108 = scmp.eq.s32.totalorder %s28, 1
      %p109 = por %p107, %p108
      %p110 = scmp.ne.s32.totalorder %s101, %s102
      %p111 = scmp.eq.s32.totalorder %s28, 0
      %p112 = por %p110, %p111
      %p113 = scmp.ne.s32.totalorder %s101, %s102
      %p114 = scmp.eq.s32.totalorder %s29, 1
      %p115 = por %p113, %p114
      %p117 = scmp.ne.s32.totalorder %s102, %s116
      %p118 = scmp.eq.s32.totalorder %s29, 0
      %p119 = por %p117, %p118
      %s121 = sadd.s32 %s120, 1
      %p124 = scmp.eq.s32.totalorder %s23, 1
      %p125 = scmp.ne.s32.totalorder %s120, %s122
      %p126 = scmp.eq.s32.totalorder %s23, 0
      %p127 = por %p125, %p126
      %p128 = scmp.ne.s32.totalorder %s120, %s122
      %p129 = scmp.eq.s32.totalorder %s28, 1
      %p130 = por %p128, %p129
      %p131 = scmp.ne.s32.totalorder %s122, %s123
      %p132 = scmp.eq.s32.totalorder %s28, 0
      %p133 = por %p131, %p132
      %p134 = scmp.ne.s32.totalorder %s122, %s123
      %p135 = scmp.eq.s32.totalorder %s29, 1
      %p136 = por %p134, %p135
      %p138 = scmp.ne.s32.totalorder %s123, %s137
      %p139 = scmp.eq.s32.totalorder %s29, 0
      %p140 = por %p138, %p139
      %s142 = sadd.s32 %s141, 1
      %p145 = scmp.eq.s32.totalorder %s23, 1
      %p146 = scmp.ne.s32.totalorder %s141, %s143
      %p147 = scmp.eq.s32.totalorder %s23, 0
      %p148 = por %p146, %p147
      %p149 = scmp.ne.s32.totalorder %s141, %s143
      %p150 = scmp.eq.s32.totalorder %s28, 1
      %p151 = por %p149, %p150
      %p152 = scmp.ne.s32.totalorder %s143, %s144
      %p153 = scmp.eq.s32.totalorder %s28, 0
      %p154 = por %p152, %p153
      %p155 = scmp.ne.s32.totalorder %s143, %s144
      %p156 = scmp.eq.s32.totalorder %s29, 1
      %p157 = por %p155, %p156
      %p159 = scmp.ne.s32.totalorder %s144, %s158
      %p160 = scmp.eq.s32.totalorder %s29, 0
      %p161 = por %p159, %p160
      %s163 = sadd.s32 %s162, 1
      %p166 = scmp.eq.s32.totalorder %s23, 1
      %p167 = scmp.ne.s32.totalorder %s162, %s164
      %p168 = scmp.eq.s32.totalorder %s23, 0
      %p169 = por %p167, %p168
      %p170 = scmp.ne.s32.totalorder %s162, %s164
      %p171 = scmp.eq.s32.totalorder %s28, 1
      %p172 = por %p170, %p171
      %p173 = scmp.ne.s32.totalorder %s164, %s165
      %p174 = scmp.eq.s32.totalorder %s28, 0
      %p175 = por %p173, %p174
      %p176 = scmp.ne.s32.totalorder %s164, %s165
      %p177 = scmp.eq.s32.totalorder %s29, 1
      %p178 = por %p176, %p177
      %p180 = scmp.ne.s32.totalorder %s165, %s179
      %p181 = scmp.eq.s32.totalorder %s29, 0
      %p182 = por %p180, %p181
      %s184 = sadd.s32 %s183, 1
      %p187 = scmp.eq.s32.totalorder %s23, 1
      %p188 = scmp.ne.s32.totalorder %s183, %s185
      %p189 = scmp.eq.s32.totalorder %s23, 0
      %p190 = por %p188, %p189
      %p191 = scmp.ne.s32.totalorder %s183, %s185
      %p192 = scmp.eq.s32.totalorder %s28, 1
      %p193 = por %p191, %p192
      %p194 = scmp.ne.s32.totalorder %s185, %s186
      %p195 = scmp.eq.s32.totalorder %s28, 0
      %p196 = por %p194, %p195
      %p197 = scmp.ne.s32.totalorder %s185, %s186
      %p198 = scmp.eq.s32.totalorder %s29, 1
      %p199 = por %p197, %p198
      %p201 = scmp.ne.s32.totalorder %s186, %s200
      %p202 = scmp.eq.s32.totalorder %s29, 0
      %p203 = por %p201, %p202
      %s205 = sadd.s32 %s204, 1
      %p208 = scmp.eq.s32.totalorder %s23, 1
      %p209 = scmp.ne.s32.totalorder %s204, %s206
      %p210 = scmp.eq.s32.totalorder %s23, 0
      %p211 = por %p209, %p210
      %p212 = scmp.ne.s32.totalorder %s204, %s206
      %p213 = scmp.eq.s32.totalorder %s28, 1
      %p214 = por %p212, %p213
      %p215 = scmp.ne.s32.totalorder %s206, %s207
      %p216 = scmp.eq.s32.totalorder %s28, 0
      %p217 = por %p215, %p216
      %p218 = scmp.ne.s32.totalorder %s206, %s207
      %p219 = scmp.eq.s32.totalorder %s29, 1
      %p220 = por %p218, %p219
      %p222 = scmp.ne.s32.totalorder %s207, %s221
      %p223 = scmp.eq.s32.totalorder %s29, 0
      %p224 = por %p222, %p223
      %s226 = sadd.s32 %s225, 1
      %p229 = scmp.eq.s32.totalorder %s23, 1
      %p230 = scmp.ne.s32.totalorder %s225, %s227
      %p231 = scmp.eq.s32.totalorder %s23, 0
      %p232 = por %p230, %p231
      %p233 = scmp.ne.s32.totalorder %s225, %s227
      %p234 = scmp.eq.s32.totalorder %s28, 1
      %p235 = por %p233, %p234
      %p236 = scmp.ne.s32.totalorder %s227, %s228
      %p237 = scmp.eq.s32.totalorder %s28, 0
      %p238 = por %p236, %p237
      %p239 = scmp.ne.s32.totalorder %s227, %s228
      %p240 = scmp.eq.s32.totalorder %s29, 1
      %p241 = por %p239, %p240
      %p243 = scmp.ne.s32.totalorder %s228, %s242
      %p244 = scmp.eq.s32.totalorder %s29, 0
      %p245 = por %p243, %p244
      %s247 = sadd.s32 %s246, 1
      %p250 = scmp.eq.s32.totalorder %s23, 1
      %p251 = scmp.ne.s32.totalorder %s246, %s248
      %p252 = scmp.eq.s32.totalorder %s23, 0
      %p253 = por %p251, %p252
      %p254 = scmp.ne.s32.totalorder %s246, %s248
      %p255 = scmp.eq.s32.totalorder %s28, 1
      %p256 = por %p254, %p255
      %p257 = scmp.ne.s32.totalorder %s248, %s249
      %p258 = scmp.eq.s32.totalorder %s28, 0
      %p259 = por %p257, %p258
      %p260 = scmp.ne.s32.totalorder %s248, %s249
      %p261 = scmp.eq.s32.totalorder %s29, 1
      %p262 = por %p260, %p261
      %p264 = scmp.ne.s32.totalorder %s249, %s263
      %p265 = scmp.eq.s32.totalorder %s29, 0
      %p266 = por %p264, %p265
      %s267 = ssub.s32 %s23, %s30
      %p268 = scmp.eq.s32.totalorder %s267, 0
      %s270 = sadd.s32 %s269, 1
      %s271 = scalar_select %p268, %s269, %s270
      %p274 = pneg %p268
      %p275 = scmp.eq.s32.totalorder %s23, 1
      %p276 = por %p274, %p275
      %p277 = scmp.ne.s32.totalorder %s269, %s272
      %p278 = scmp.eq.s32.totalorder %s23, 0
      %p279 = por %p277, %p278
      %p280 = scmp.ne.s32.totalorder %s269, %s272
      %p281 = scmp.eq.s32.totalorder %s28, 1
      %p282 = por %p280, %p281
      %p283 = scmp.ne.s32.totalorder %s272, %s273
      %p284 = scmp.eq.s32.totalorder %s28, 0
      %p285 = por %p283, %p284
      %p286 = scmp.ne.s32.totalorder %s272, %s273
      %p287 = scmp.eq.s32.totalorder %s29, 1
      %p288 = por %p286, %p287
      %p290 = scmp.ne.s32.totalorder %s273, %s289
      %p291 = scmp.eq.s32.totalorder %s29, 0
      %p292 = por %p290, %p291
      %p293 = scmp.le.s32.totalorder 1, %s23
      %p294 = scmp.lt.s32.totalorder %s23, 3
      %p295 = pnand %p293, %p294
      %p296 = pneg %p295
      // Predicated region
      $region9: #{tpu_custom_call.1} parent=5 // pred_check
        _
      $region10: #{tpu_custom_call.1} parent=5 // pred_check_branch
        %298 = sbr.rel (%p295) target = $region12
      $region11: #{tpu_custom_call.1} parent=5 // pred_region
        %s299 = ssub.s32 %s23, 1
        // Predicated region
        $region13: #{tpu_custom_call.1} parent=11 // pred_check
          %p300 = pneg %p70
        $region14: #{tpu_custom_call.1} parent=11 // pred_check_branch
          %302 = sbr.rel (%p300) target = $region16
        $region15: #{tpu_custom_call.1} parent=11 // pred_region
          _
        $region16: #{tpu_custom_call.1} parent=11 // pred_fallthru
          _
        // Predicated region
        $region17: #{tpu_custom_call.1} parent=11 // pred_check
          %p303 = pneg %p91
        $region18: #{tpu_custom_call.1} parent=11 // pred_check_branch
          %305 = sbr.rel (%p303) target = $region20
        $region19: #{tpu_custom_call.1} parent=11 // pred_region
          _
        $region20: #{tpu_custom_call.1} parent=11 // pred_fallthru
          _
        // Predicated region
        $region21: #{tpu_custom_call.1} parent=11 // pred_check
          %p306 = pneg %p112
        $region22: #{tpu_custom_call.1} parent=11 // pred_check_branch
          %308 = sbr.rel (%p306) target = $region24
        $region23: #{tpu_custom_call.1} parent=11 // pred_region
          _
        $region24: #{tpu_custom_call.1} parent=11 // pred_fallthru
          _
        // Predicated region
        $region25: #{tpu_custom_call.1} parent=11 // pred_check
          %p309 = pneg %p133
        $region26: #{tpu_custom_call.1} parent=11 // pred_check_branch
          %311 = sbr.rel (%p309) target = $region28
        $region27: #{tpu_custom_call.1} parent=11 // pred_region
          _
        $region28: #{tpu_custom_call.1} parent=11 // pred_fallthru
          _
        // Predicated region
        $region29: #{tpu_custom_call.1} parent=11 // pred_check
          %p312 = pneg %p154
        $region30: #{tpu_custom_call.1} parent=11 // pred_check_branch
          %314 = sbr.rel (%p312) target = $region32
        $region31: #{tpu_custom_call.1} parent=11 // pred_region
          _
        $region32: #{tpu_custom_call.1} parent=11 // pred_fallthru
          _
        // Predicated region
        $region33: #{tpu_custom_call.1} parent=11 // pred_check
          %p315 = pneg %p175
        $region34: #{tpu_custom_call.1} parent=11 // pred_check_branch
          %317 = sbr.rel (%p315) target = $region36
        $region35: #{tpu_custom_call.1} parent=11 // pred_region
          _
        $region36: #{tpu_custom_call.1} parent=11 // pred_fallthru
          _
        // Predicated region
        $region37: #{tpu_custom_call.1} parent=11 // pred_check
          %p318 = pneg %p196
        $region38: #{tpu_custom_call.1} parent=11 // pred_check_branch
          %320 = sbr.rel (%p318) target = $region40
        $region39: #{tpu_custom_call.1} parent=11 // pred_region
          _
        $region40: #{tpu_custom_call.1} parent=11 // pred_fallthru
          _
        // Predicated region
        $region41: #{tpu_custom_call.1} parent=11 // pred_check
          %p321 = pneg %p217
        $region42: #{tpu_custom_call.1} parent=11 // pred_check_branch
          %323 = sbr.rel (%p321) target = $region44
        $region43: #{tpu_custom_call.1} parent=11 // pred_region
          _
        $region44: #{tpu_custom_call.1} parent=11 // pred_fallthru
          _
        // Predicated region
        $region45: #{tpu_custom_call.1} parent=11 // pred_check
          %p324 = pneg %p238
        $region46: #{tpu_custom_call.1} parent=11 // pred_check_branch
          %326 = sbr.rel (%p324) target = $region48
        $region47: #{tpu_custom_call.1} parent=11 // pred_region
          _
        $region48: #{tpu_custom_call.1} parent=11 // pred_fallthru
          _
        // Predicated region
        $region49: #{tpu_custom_call.1} parent=11 // pred_check
          %p327 = pneg %p259
        $region50: #{tpu_custom_call.1} parent=11 // pred_check_branch
          %329 = sbr.rel (%p327) target = $region52
        $region51: #{tpu_custom_call.1} parent=11 // pred_region
          _
        $region52: #{tpu_custom_call.1} parent=11 // pred_fallthru
          _
      $region12: #{tpu_custom_call.1} parent=5 // pred_fallthru
        _
      %p330 = scmp.lt.s32.totalorder %s23, 2
      // Predicated region
      $region53: #{tpu_custom_call.1} parent=5 // pred_check
        %p331 = pneg %p330
      $region54: #{tpu_custom_call.1} parent=5 // pred_check_branch
        %333 = sbr.rel (%p331) target = $region56
      $region55: #{tpu_custom_call.1} parent=5 // pred_region
        // Predicated region
        $region57: #{tpu_custom_call.1} parent=55 // pred_check
          %p334 = pneg %p43
        $region58: #{tpu_custom_call.1} parent=55 // pred_check_branch
          %336 = sbr.rel (%p334) target = $region60
        $region59: #{tpu_custom_call.1} parent=55 // pred_region
          %s337 = sand.u32 %s33, 1
          %s338 = scalar_lea.sflag [#allocation8], %s337
          %s339 = sand.u32 %s33, 1
          %s340 = smul.addr %s339, 16
          %s341 = scalar_lea.vmem [#allocation7], %s340
          %s343 = ssub.s32 256, 256
          %344 = vsyncadd %s338, %s343
          %s345 = smul.addr %s23, 2
          %s346 = smul.addr %s345, 128
          %s347 = scalar_lea.hbm %s0, %s346
          %s348 = sshll.u32 %s341, 4
          %s349 = int_to_ptr.vmem [resolvable:$true] %s348
          %354 = dma.hbm_to_vmem [thread:$0]  %s347, 256, %s349, %s338, 128, 128, 8
        $region60: #{tpu_custom_call.1} parent=55 // pred_fallthru
          _
      $region56: #{tpu_custom_call.1} parent=5 // pred_fallthru
        _
      %p355 = scmp.le.s32.totalorder 1, %s23
      %p356 = scmp.lt.s32.totalorder %s23, 3
      %p357 = pnand %p355, %p356
      %p358 = pneg %p357
      // Predicated region
      $region61: #{tpu_custom_call.1} parent=5 // pred_check
        _
      $region62: #{tpu_custom_call.1} parent=5 // pred_check_branch
        %360 = sbr.rel (%p357) target = $region64
      $region63: #{tpu_custom_call.1} parent=5 // pred_region
        %s361 = ssub.s32 %s23, 1
        %s362 = sand.u32 %s36, 1
        %s363 = scalar_lea.sflag [#allocation8], %s362
        %s364 = sand.u32 %s36, 1
        %s365 = smul.addr %s364, 16
        %s366 = scalar_lea.vmem [#allocation7], %s365
        // Predicated region
        $region65: #{tpu_custom_call.1} parent=63 // pred_check
          %p367 = pneg %p49
        $region66: #{tpu_custom_call.1} parent=63 // pred_check_branch
          %369 = sbr.rel (%p367) target = $region68
        $region67: #{tpu_custom_call.1} parent=63 // pred_region
          %370 = dma.done %s363, 256
        $region68: #{tpu_custom_call.1} parent=63 // pred_fallthru
          _
        %s371 = sand.u32 %s36, 1
        %s372 = scalar_lea.sflag [#allocation8], %s371
        %s373 = sand.u32 %s36, 1
        %s374 = smul.addr %s373, 16
        %s375 = scalar_lea.vmem [#allocation7], %s374
        %p376 = pneg %p49
        %p377 = pneg %p46
        %p378 = pneg %p70
        %p379 = pneg %p67
        %p380 = pneg %p91
        %p381 = pneg %p88
        %p382 = pneg %p112
        %p383 = pneg %p109
        %p384 = pneg %p133
        %p385 = pneg %p130
        %p386 = pneg %p154
        %p387 = pneg %p151
        %p388 = pneg %p175
        %p389 = pneg %p172
        %p390 = pneg %p196
        %p391 = pneg %p193
        %p392 = pneg %p217
        %p393 = pneg %p214
        %p394 = pneg %p238
        %p395 = pneg %p235
        %p396 = pneg %p259
        %p397 = pneg %p256
        %p398 = pneg %p285
        %p399 = pneg %p282
        %s400 = sand.u32 %s272, 1
        %s401 = scalar_lea.sflag [#allocation9], %s400
        %s402 = sand.u32 %s272, 1
        %s403 = smul.addr %s402, 16
        %s404 = scalar_lea.vmem [#allocation10], %s403
        %v406 = vld [vmem:[%s366] sm:$0xff]
        %v407 = vld [vmem:[%s366 + $0x8] sm:$0xff]
        %408 = vadd.xlane.f32.xlu0 %v406
        %v409 = vpop.xlane.xlu0 %408
        %410 = vadd.xlane.f32.xlu0 %v407
        %v411 = vpop.xlane.xlu0 %410
        %v412 = vrcp.pop 128.0
        %v413 = vmul.f32 %v409, %v412
        %v414 = vmul.f32 %v411, %v412
        %v415 = vsub.f32 %v406, %v413
        %v416 = vsub.f32 %v407, %v414
        %v417 = vmul.f32 %v415, %v415
        %v418 = vmul.f32 %v416, %v416
        %419 = vadd.xlane.f32.xlu0 %v417
        %v420 = vpop.xlane.xlu0 %419
        %421 = vadd.xlane.f32.xlu0 %v418
        %v422 = vpop.xlane.xlu0 %421
        %v423 = vmul.f32 %v420, %v412
        %v424 = vmul.f32 %v422, %v412
        %v425 = vadd.f32 %v423, 1e-05
        %v426 = vadd.f32 %v424, 1e-05
        %v427 = vrsqrt.pop %v425
        %v428 = vrsqrt.pop %v426
        %v429 = vmul.f32 %v415, %v427
        %v430 = vmul.f32 %v416, %v428
        %v431 = vld [vmem:[%s1] sm:$0x1]
        %v433 = vlaneseq
        %v434 = vshrl.u32 %v433, 7
        %v435 = vsub.s32 0, %v434
        %v436 = vrot.slane %v431, %v435
        %v438 = vmul.f32 %v429, %v436
        %v439 = vmul.f32 %v430, %v436
        %v440 = vld [vmem:[%s2] sm:$0x1]
        %v442 = vlaneseq
        %v443 = vshrl.u32 %v442, 7
        %v444 = vsub.s32 0, %v443
        %v445 = vrot.slane %v440, %v444
        %v447 = vadd.f32 %v438, %v445
        %v448 = vadd.f32 %v439, %v445
        %v449 = vpack.c.bf16 %v448, %v447
        %v450 = vld [vmem:[%s3] sm:$0xf]
        %v451 = vld [vmem:[%s3 + $0x4] sm:$0xf]
        %v452 = vld [vmem:[%s3 + $0x8] sm:$0xf]
        %v453 = vld [vmem:[%s3 + $0xc] sm:$0xf]
        %v454 = vld [vmem:[%s3 + $0x10] sm:$0xf]
        %v455 = vld [vmem:[%s3 + $0x14] sm:$0xf]
        %v456 = vld [vmem:[%s3 + $0x18] sm:$0xf]
        %v457 = vld [vmem:[%s3 + $0x1c] sm:$0xf]
        %v458 = vld [vmem:[%s3 + $0x20] sm:$0xf]
        %v459 = vld [vmem:[%s3 + $0x24] sm:$0xf]
        %v460 = vld [vmem:[%s3 + $0x28] sm:$0xf]
        %v461 = vld [vmem:[%s3 + $0x2c] sm:$0xf]
        %v462 = vld [vmem:[%s3 + $0x30] sm:$0xf]
        %v463 = vld [vmem:[%s3 + $0x34] sm:$0xf]
        %v464 = vld [vmem:[%s3 + $0x38] sm:$0xf]
        %v465 = vld [vmem:[%s3 + $0x3c] sm:$0xf]
        %v466 = vld [vmem:[%s4] sm:$0x1]
        %v468 = vlaneseq
        %v469 = vshrl.u32 %v468, 7
        %v470 = vsub.s32 0, %v469
        %v471 = vrot.slane %v466, %v470
        %v489 = vunpack.c.l.b16 %v450
        %v490 = vunpack.c.l.b16 %v451
        %v491 = vunpack.c.l.b16 %v452
        %v492 = vunpack.c.l.b16 %v453
        %v493 = vunpack.c.l.b16 %v454
        %v494 = vunpack.c.l.b16 %v455
        %v495 = vunpack.c.l.b16 %v456
        %v496 = vunpack.c.l.b16 %v457
        %v497 = vunpack.c.l.b16 %v458
        %v498 = vunpack.c.l.b16 %v459
        %v499 = vunpack.c.l.b16 %v460
        %v500 = vunpack.c.l.b16 %v461
        %v501 = vunpack.c.l.b16 %v462
        %v502 = vunpack.c.l.b16 %v463
        %v503 = vunpack.c.l.b16 %v464
        %v504 = vunpack.c.l.b16 %v465
        %v505 = vpack.c.b16 %v490, %v489
        %v506 = vpack.c.b16 %v492, %v491
        %v507 = vpack.c.b16 %v494, %v493
        %v508 = vpack.c.b16 %v496, %v495
        %v509 = vpack.c.b16 %v498, %v497
        %v510 = vpack.c.b16 %v500, %v499
        %v511 = vpack.c.b16 %v502, %v501
        %v512 = vpack.c.b16 %v504, %v503
        %521 = vmatprep.subr.bf16.mxu0 0
        %522 = vmatpush1.bf16.msra.mxu0 %v505
        %523 = vmatprep.subr.bf16.mxu0 0
        %524 = vmatpush1.bf16.msra.mxu0 %v506
        %525 = vmatprep.subr.bf16.mxu0 0
        %526 = vmatpush1.bf16.msra.mxu0 %v507
        %527 = vmatprep.subr.bf16.mxu0 0
        %528 = vmatpush1.bf16.msra.mxu0 %v508
        %529 = vmatprep.subr.bf16.mxu0 0
        %530 = vmatpush1.bf16.msra.mxu0 %v509
        %531 = vmatprep.subr.bf16.mxu0 0
        %532 = vmatpush1.bf16.msra.mxu0 %v510
        %533 = vmatprep.subr.bf16.mxu0 0
        %534 = vmatpush1.bf16.msra.mxu0 %v511
        %535 = vmatprep.subr.bf16.mxu0 0
        %536 = vmatpush1.bf16.msra.mxu0 %v512
        %537 = vmatprep.subr.bf16.mxu0 0
        %538 = vmatpush1.bf16.msra.mxu0 0
        %539 = vmatprep.subr.bf16.mxu0 0
        %540 = vmatpush1.bf16.msra.mxu0 0
        %541 = vmatprep.subr.bf16.mxu0 0
        %542 = vmatpush1.bf16.msra.mxu0 0
        %543 = vmatprep.subr.bf16.mxu0 0
        %544 = vmatpush1.bf16.msra.mxu0 0
        %545 = vmatprep.subr.bf16.mxu0 0
        %546 = vmatpush1.bf16.msra.mxu0 0
        %547 = vmatprep.subr.bf16.mxu0 0
        %548 = vmatpush1.bf16.msra.mxu0 0
        %549 = vmatprep.subr.bf16.mxu0 0
        %550 = vmatpush1.bf16.msra.mxu0 0
        %551 = vmatprep.subr.bf16.mxu0 0
        %552 = vmatpush1.bf16.msra.mxu0 0
        %553 = vmatprep.mubr.bf16.mxu0 0
        %554 = vmatmul.mubr.bf16.gmra.mrb[0].mxu0 %v449
        %v555 = vpop.f32.mrb[0].mxu0
        %v556 = vadd.f32 %v471, %v555
        %v557 = vpop.f32.mrb[0].mxu0
        %v558 = vpop.f32.mrb[0].mxu0
        %v559 = vadd.f32 %v471, %v558
        %v560 = vpop.f32.mrb[0].mxu0
        %561 = vdwg.mxu0
        %v562 = vsub.f32 0.0, %v556
        %v563 = vsub.f32 0.0, %v559
        %v564 = vmul.f32 %v562, 1.442695
        %v565 = vpow.pop %v564
        %v566 = vmul.f32 %v563, 1.442695
        %v567 = vpow.pop %v566
        %v568 = vadd.f32 %v565, 1.0
        %v569 = vadd.f32 %v567, 1.0
        %v570 = vrcp.pop %v568
        %v571 = vmul.f32 1.0, %v570
        %v572 = vrcp.pop %v569
        %v573 = vmul.f32 1.0, %v572
        %v574 = vmul.f32 %v556, %v571
        %v575 = vmul.f32 %v559, %v573
        %576 = vst [vmem:[#allocation6] sm:$0xff] %v574
        %577 = vst [vmem:[#allocation6 + $0x8] sm:$0xff] %v575
        %v578 = vpack.c.bf16 %v559, %v556
        %v579 = vld [vmem:[%s5] sm:$0xff]
        %v580 = vld [vmem:[%s5 + $0x8] sm:$0xff]
        %v581 = vld [vmem:[%s5 + $0x10] sm:$0xff]
        %v582 = vld [vmem:[%s5 + $0x18] sm:$0xff]
        %v583 = vld [vmem:[%s5 + $0x20] sm:$0xff]
        %v584 = vld [vmem:[%s5 + $0x28] sm:$0xff]
        %v585 = vld [vmem:[%s5 + $0x30] sm:$0xff]
        %v586 = vld [vmem:[%s5 + $0x38] sm:$0xff]
        %v587 = vld [vmem:[%s5 + $0x40] sm:$0xff]
        %v588 = vld [vmem:[%s5 + $0x48] sm:$0xff]
        %v589 = vld [vmem:[%s5 + $0x50] sm:$0xff]
        %v590 = vld [vmem:[%s5 + $0x58] sm:$0xff]
        %v591 = vld [vmem:[%s5 + $0x60] sm:$0xff]
        %v592 = vld [vmem:[%s5 + $0x68] sm:$0xff]
        %v593 = vld [vmem:[%s5 + $0x70] sm:$0xff]
        %v594 = vld [vmem:[%s5 + $0x78] sm:$0xff]
        %v595 = vld [vmem:[%s6] sm:$0x3]
        %v597 = vlaneseq
        %v598 = vshrl.u32 %v597, 7
        %v599 = vsub.s32 0, %v598
        %v600 = vrot.slane %v595, %v599
        %v601 = vlaneseq
        %v602 = vshrl.u32 %v601, 7
        %v603 = vsub.s32 1, %v602
        %v604 = vrot.slane %v595, %v603
        %v623 = vunpack.c.l.b16 %v579
        %v624 = vunpack.c.h.b16 %v579
        %v625 = vunpack.c.l.b16 %v580
        %v626 = vunpack.c.h.b16 %v580
        %v627 = vunpack.c.l.b16 %v581
        %v628 = vunpack.c.h.b16 %v581
        %v629 = vunpack.c.l.b16 %v582
        %v630 = vunpack.c.h.b16 %v582
        %v631 = vunpack.c.l.b16 %v583
        %v632 = vunpack.c.h.b16 %v583
        %v633 = vunpack.c.l.b16 %v584
        %v634 = vunpack.c.h.b16 %v584
        %v635 = vunpack.c.l.b16 %v585
        %v636 = vunpack.c.h.b16 %v585
        %v637 = vunpack.c.l.b16 %v586
        %v638 = vunpack.c.h.b16 %v586
        %v639 = vunpack.c.l.b16 %v587
        %v640 = vunpack.c.h.b16 %v587
        %v641 = vunpack.c.l.b16 %v588
        %v642 = vunpack.c.h.b16 %v588
        %v643 = vunpack.c.l.b16 %v589
        %v644 = vunpack.c.h.b16 %v589
        %v645 = vunpack.c.l.b16 %v590
        %v646 = vunpack.c.h.b16 %v590
        %v647 = vunpack.c.l.b16 %v591
        %v648 = vunpack.c.h.b16 %v591
        %v649 = vunpack.c.l.b16 %v592
        %v650 = vunpack.c.h.b16 %v592
        %v651 = vunpack.c.l.b16 %v593
        %v652 = vunpack.c.h.b16 %v593
        %v653 = vunpack.c.l.b16 %v594
        %v654 = vunpack.c.h.b16 %v594
        %v655 = vpack.c.b16 %v625, %v623
        %v656 = vpack.c.b16 %v626, %v624
        %v657 = vpack.c.b16 %v629, %v627
        %v658 = vpack.c.b16 %v630, %v628
        %v659 = vpack.c.b16 %v633, %v631
        %v660 = vpack.c.b16 %v634, %v632
        %v661 = vpack.c.b16 %v637, %v635
        %v662 = vpack.c.b16 %v638, %v636
        %v663 = vpack.c.b16 %v641, %v639
        %v664 = vpack.c.b16 %v642, %v640
        %v665 = vpack.c.b16 %v645, %v643
        %v666 = vpack.c.b16 %v646, %v644
        %v667 = vpack.c.b16 %v649, %v647
        %v668 = vpack.c.b16 %v650, %v648
        %v669 = vpack.c.b16 %v653, %v651
        %v670 = vpack.c.b16 %v654, %v652
        %687 = vmatprep.subr.bf16.mxu0 %v656
        %688 = vmatpush1.bf16.msra.mxu0 %v655
        %689 = vmatprep.subr.bf16.mxu0 %v658
        %690 = vmatpush1.bf16.msra.mxu0 %v657
        %691 = vmatprep.subr.bf16.mxu0 %v660
        %692 = vmatpush1.bf16.msra.mxu0 %v659
        %693 = vmatprep.subr.bf16.mxu0 %v662
        %694 = vmatpush1.bf16.msra.mxu0 %v661
        %695 = vmatprep.subr.bf16.mxu0 %v664
        %696 = vmatpush1.bf16.msra.mxu0 %v663
        %697 = vmatprep.subr.bf16.mxu0 %v666
        %698 = vmatpush1.bf16.msra.mxu0 %v665
        %699 = vmatprep.subr.bf16.mxu0 %v668
        %700 = vmatpush1.bf16.msra.mxu0 %v667
        %701 = vmatprep.subr.bf16.mxu0 %v670
        %702 = vmatpush1.bf16.msra.mxu0 %v669
        %703 = vmatprep.subr.bf16.mxu0 0
        %704 = vmatpush1.bf16.msra.mxu0 0
        %705 = vmatprep.subr.bf16.mxu0 0
        %706 = vmatpush1.bf16.msra.mxu0 0
        %707 = vmatprep.subr.bf16.mxu0 0
        %708 = vmatpush1.bf16.msra.mxu0 0
        %709 = vmatprep.subr.bf16.mxu0 0
        %710 = vmatpush1.bf16.msra.mxu0 0
        %711 = vmatprep.subr.bf16.mxu0 0
        %712 = vmatpush1.bf16.msra.mxu0 0
        %713 = vmatprep.subr.bf16.mxu0 0
        %714 = vmatpush1.bf16.msra.mxu0 0
        %715 = vmatprep.subr.bf16.mxu0 0
        %716 = vmatpush1.bf16.msra.mxu0 0
        %717 = vmatprep.subr.bf16.mxu0 0
        %718 = vmatpush1.bf16.msra.mxu0 0
        %719 = vmatprep.mubr.bf16.mxu0 0
        %720 = vmatmul.mubr.bf16.gmra.mrb[0].mxu0 %v578
        %v721 = vpop.f32.mrb[0].mxu0
        %v722 = vadd.f32 %v600, %v721
        %v723 = vpop.f32.mrb[0].mxu0
        %v724 = vadd.f32 %v604, %v723
        %v725 = vpop.f32.mrb[0].mxu0
        %v726 = vadd.f32 %v600, %v725
        %v727 = vpop.f32.mrb[0].mxu0
        %v728 = vadd.f32 %v604, %v727
        %729 = vdwg.mxu0
        %v730 = vmax.f32 %v722, 0.0
        %v731 = vmax.f32 %v724, 0.0
        %v732 = vmax.f32 %v726, 0.0
        %v733 = vmax.f32 %v728, 0.0
        %v734 = vand.u32 2147483647, %v722
        %v735 = vand.u32 2147483647, %v724
        %v736 = vand.u32 2147483647, %v726
        %v737 = vand.u32 2147483647, %v728
        %v738 = vsub.f32 0.0, %v734
        %v739 = vsub.f32 0.0, %v735
        %v740 = vsub.f32 0.0, %v736
        %v741 = vsub.f32 0.0, %v737
        %v742 = vmul.f32 %v738, 1.442695
        %v743 = vpow.pop %v742
        %v744 = vmul.f32 %v739, 1.442695
        %v745 = vpow.pop %v744
        %v746 = vmul.f32 %v740, 1.442695
        %v747 = vpow.pop %v746
        %v748 = vmul.f32 %v741, 1.442695
        %v749 = vpow.pop %v748
        %v750 = vadd.f32 %v743, 1.0
        %v751 = vadd.f32 %v745, 1.0
        %v752 = vadd.f32 %v747, 1.0
        %v753 = vadd.f32 %v749, 1.0
        %v754 = vlog2.pop %v750
        %v755 = vmul.f32 %v754, 0.6931472
        %v756 = vlog2.pop %v751
        %v757 = vmul.f32 %v756, 0.6931472
        %v758 = vlog2.pop %v752
        %v759 = vmul.f32 %v758, 0.6931472
        %v760 = vlog2.pop %v753
        %v761 = vmul.f32 %v760, 0.6931472
        %v762 = vadd.f32 %v730, %v755
        %v763 = vadd.f32 %v731, %v757
        %v764 = vadd.f32 %v732, %v759
        %v765 = vadd.f32 %v733, %v761
        %766 = vst [vmem:[#allocation2] sm:$0xff] %v762
        %767 = vst [vmem:[#allocation2 + $0x8] sm:$0xff] %v764
        %v768 = vpack.c.bf16 %v764, %v762
        %v769 = vld [vmem:[%s7] sm:$0xff]
        %v770 = vld [vmem:[%s7 + $0x8] sm:$0xff]
        %v771 = vld [vmem:[%s7 + $0x10] sm:$0xff]
        %v772 = vld [vmem:[%s7 + $0x18] sm:$0xff]
        %v773 = vld [vmem:[%s7 + $0x20] sm:$0xff]
        %v774 = vld [vmem:[%s7 + $0x28] sm:$0xff]
        %v775 = vld [vmem:[%s7 + $0x30] sm:$0xff]
        %v776 = vld [vmem:[%s7 + $0x38] sm:$0xff]
        %v777 = vld [vmem:[%s7 + $0x40] sm:$0xff]
        %v778 = vld [vmem:[%s7 + $0x48] sm:$0xff]
        %v779 = vld [vmem:[%s7 + $0x50] sm:$0xff]
        %v780 = vld [vmem:[%s7 + $0x58] sm:$0xff]
        %v781 = vld [vmem:[%s7 + $0x60] sm:$0xff]
        %v782 = vld [vmem:[%s7 + $0x68] sm:$0xff]
        %v783 = vld [vmem:[%s7 + $0x70] sm:$0xff]
        %v784 = vld [vmem:[%s7 + $0x78] sm:$0xff]
        %v801 = vunpack.c.l.b16 %v769
        %v802 = vunpack.c.h.b16 %v769
        %v803 = vunpack.c.l.b16 %v770
        %v804 = vunpack.c.h.b16 %v770
        %v805 = vunpack.c.l.b16 %v771
        %v806 = vunpack.c.h.b16 %v771
        %v807 = vunpack.c.l.b16 %v772
        %v808 = vunpack.c.h.b16 %v772
        %v809 = vunpack.c.l.b16 %v773
        %v810 = vunpack.c.h.b16 %v773
        %v811 = vunpack.c.l.b16 %v774
        %v812 = vunpack.c.h.b16 %v774
        %v813 = vunpack.c.l.b16 %v775
        %v814 = vunpack.c.h.b16 %v775
        %v815 = vunpack.c.l.b16 %v776
        %v816 = vunpack.c.h.b16 %v776
        %v817 = vunpack.c.l.b16 %v777
        %v818 = vunpack.c.h.b16 %v777
        %v819 = vunpack.c.l.b16 %v778
        %v820 = vunpack.c.h.b16 %v778
        %v821 = vunpack.c.l.b16 %v779
        %v822 = vunpack.c.h.b16 %v779
        %v823 = vunpack.c.l.b16 %v780
        %v824 = vunpack.c.h.b16 %v780
        %v825 = vunpack.c.l.b16 %v781
        %v826 = vunpack.c.h.b16 %v781
        %v827 = vunpack.c.l.b16 %v782
        %v828 = vunpack.c.h.b16 %v782
        %v829 = vunpack.c.l.b16 %v783
        %v830 = vunpack.c.h.b16 %v783
        %v831 = vunpack.c.l.b16 %v784
        %v832 = vunpack.c.h.b16 %v784
        %v833 = vpack.c.b16 %v803, %v801
        %v834 = vpack.c.b16 %v804, %v802
        %v835 = vpack.c.b16 %v807, %v805
        %v836 = vpack.c.b16 %v808, %v806
        %v837 = vpack.c.b16 %v811, %v809
        %v838 = vpack.c.b16 %v812, %v810
        %v839 = vpack.c.b16 %v815, %v813
        %v840 = vpack.c.b16 %v816, %v814
        %v841 = vpack.c.b16 %v819, %v817
        %v842 = vpack.c.b16 %v820, %v818
        %v843 = vpack.c.b16 %v823, %v821
        %v844 = vpack.c.b16 %v824, %v822
        %v845 = vpack.c.b16 %v827, %v825
        %v846 = vpack.c.b16 %v828, %v826
        %v847 = vpack.c.b16 %v831, %v829
        %v848 = vpack.c.b16 %v832, %v830
        %865 = vmatprep.subr.bf16.mxu0 %v834
        %866 = vmatpush1.bf16.msra.mxu0 %v833
        %867 = vmatprep.subr.bf16.mxu0 %v836
        %868 = vmatpush1.bf16.msra.mxu0 %v835
        %869 = vmatprep.subr.bf16.mxu0 %v838
        %870 = vmatpush1.bf16.msra.mxu0 %v837
        %871 = vmatprep.subr.bf16.mxu0 %v840
        %872 = vmatpush1.bf16.msra.mxu0 %v839
        %873 = vmatprep.subr.bf16.mxu0 %v842
        %874 = vmatpush1.bf16.msra.mxu0 %v841
        %875 = vmatprep.subr.bf16.mxu0 %v844
        %876 = vmatpush1.bf16.msra.mxu0 %v843
        %877 = vmatprep.subr.bf16.mxu0 %v846
        %878 = vmatpush1.bf16.msra.mxu0 %v845
        %879 = vmatprep.subr.bf16.mxu0 %v848
        %880 = vmatpush1.bf16.msra.mxu0 %v847
        %881 = vmatprep.subr.bf16.mxu0 0
        %882 = vmatpush1.bf16.msra.mxu0 0
        %883 = vmatprep.subr.bf16.mxu0 0
        %884 = vmatpush1.bf16.msra.mxu0 0
        %885 = vmatprep.subr.bf16.mxu0 0
        %886 = vmatpush1.bf16.msra.mxu0 0
        %887 = vmatprep.subr.bf16.mxu0 0
        %888 = vmatpush1.bf16.msra.mxu0 0
        %889 = vmatprep.subr.bf16.mxu0 0
        %890 = vmatpush1.bf16.msra.mxu0 0
        %891 = vmatprep.subr.bf16.mxu0 0
        %892 = vmatpush1.bf16.msra.mxu0 0
        %893 = vmatprep.subr.bf16.mxu0 0
        %894 = vmatpush1.bf16.msra.mxu0 0
        %895 = vmatprep.subr.bf16.mxu0 0
        %896 = vmatpush1.bf16.msra.mxu0 0
        %897 = vmatprep.mubr.bf16.mxu0 0
        %898 = vmatmul.mubr.bf16.gmra.mrb[0].mxu0 %v768
        %v899 = vpop.f32.mrb[0].mxu0
        %v900 = vadd.f32 0.0, %v899
        %v901 = vpop.f32.mrb[0].mxu0
        %v902 = vadd.f32 0.0, %v901
        %v903 = vpop.f32.mrb[0].mxu0
        %v904 = vadd.f32 0.0, %v903
        %v905 = vpop.f32.mrb[0].mxu0
        %v906 = vadd.f32 0.0, %v905
        %907 = vdwg.mxu0
        %v908 = vld [vmem:[%s8] sm:$0x1]
        %v910 = vlaneseq
        %v911 = vshrl.u32 %v910, 7
        %v912 = vsub.s32 0, %v911
        %v913 = vrot.slane %v908, %v912
        %v915 = vadd.f32 %v900, %v913
        %v916 = vadd.f32 %v904, %v913
        %v917 = vmax.f32 %v915, 0.0
        %v918 = vmax.f32 %v916, 0.0
        %v919 = vand.u32 2147483647, %v915
        %v920 = vand.u32 2147483647, %v916
        %v921 = vsub.f32 0.0, %v919
        %v922 = vsub.f32 0.0, %v920
        %v923 = vmul.f32 %v921, 1.442695
        %v924 = vpow.pop %v923
        %v925 = vmul.f32 %v922, 1.442695
        %v926 = vpow.pop %v925
        %v927 = vadd.f32 %v924, 1.0
        %v928 = vadd.f32 %v926, 1.0
        %v929 = vlog2.pop %v927
        %v930 = vmul.f32 %v929, 0.6931472
        %v931 = vlog2.pop %v928
        %v932 = vmul.f32 %v931, 0.6931472
        %v933 = vadd.f32 %v917, %v930
        %v934 = vadd.f32 %v918, %v932
        %935 = vst [vmem:[#allocation3] sm:$0xff] %v933
        %936 = vst [vmem:[#allocation3 + $0x8] sm:$0xff] %v934
        %vm937 = vcmask 64512
        %938 = vst.msk [vmem:[#allocation4] sm:$0xff] %vm937, %v902
        %939 = vst.msk [vmem:[#allocation4 + $0x8] sm:$0xff] %vm937, %v906
        %942 = vrot.lane.b32.xlu0 %v902, 120
        %v943 = vpop.permute.xlu0 %942
        %944 = vrot.lane.b32.xlu0 %v906, 120
        %v945 = vpop.permute.xlu0 %944
        %948 = vst.msk [vmem:[#allocation5] sm:$0xff] %vm937, %v943
        %949 = vst.msk [vmem:[#allocation5 + $0x8] sm:$0xff] %vm937, %v945
        %s950 = scalar_lea.vmem [#allocation2], 16
        %951 = vst [vmem:[%s950] sm:$0xff] %v763
        %952 = vst [vmem:[%s950 + $0x8] sm:$0xff] %v765
        %v953 = vpack.c.bf16 %v765, %v763
        %v954 = vld [vmem:[%s7] sm:$0xff]
        %v955 = vld [vmem:[%s7 + $0x8] sm:$0xff]
        %v956 = vld [vmem:[%s7 + $0x10] sm:$0xff]
        %v957 = vld [vmem:[%s7 + $0x18] sm:$0xff]
        %v958 = vld [vmem:[%s7 + $0x20] sm:$0xff]
        %v959 = vld [vmem:[%s7 + $0x28] sm:$0xff]
        %v960 = vld [vmem:[%s7 + $0x30] sm:$0xff]
        %v961 = vld [vmem:[%s7 + $0x38] sm:$0xff]
        %v962 = vld [vmem:[%s7 + $0x40] sm:$0xff]
        %v963 = vld [vmem:[%s7 + $0x48] sm:$0xff]
        %v964 = vld [vmem:[%s7 + $0x50] sm:$0xff]
        %v965 = vld [vmem:[%s7 + $0x58] sm:$0xff]
        %v966 = vld [vmem:[%s7 + $0x60] sm:$0xff]
        %v967 = vld [vmem:[%s7 + $0x68] sm:$0xff]
        %v968 = vld [vmem:[%s7 + $0x70] sm:$0xff]
        %v969 = vld [vmem:[%s7 + $0x78] sm:$0xff]
        %v986 = vunpack.c.l.b16 %v954
        %v987 = vunpack.c.h.b16 %v954
        %v988 = vunpack.c.l.b16 %v955
        %v989 = vunpack.c.h.b16 %v955
        %v990 = vunpack.c.l.b16 %v956
        %v991 = vunpack.c.h.b16 %v956
        %v992 = vunpack.c.l.b16 %v957
        %v993 = vunpack.c.h.b16 %v957
        %v994 = vunpack.c.l.b16 %v958
        %v995 = vunpack.c.h.b16 %v958
        %v996 = vunpack.c.l.b16 %v959
        %v997 = vunpack.c.h.b16 %v959
        %v998 = vunpack.c.l.b16 %v960
        %v999 = vunpack.c.h.b16 %v960
        %v1000 = vunpack.c.l.b16 %v961
        %v1001 = vunpack.c.h.b16 %v961
        %v1002 = vunpack.c.l.b16 %v962
        %v1003 = vunpack.c.h.b16 %v962
        %v1004 = vunpack.c.l.b16 %v963
        %v1005 = vunpack.c.h.b16 %v963
        %v1006 = vunpack.c.l.b16 %v964
        %v1007 = vunpack.c.h.b16 %v964
        %v1008 = vunpack.c.l.b16 %v965
        %v1009 = vunpack.c.h.b16 %v965
        %v1010 = vunpack.c.l.b16 %v966
        %v1011 = vunpack.c.h.b16 %v966
        %v1012 = vunpack.c.l.b16 %v967
        %v1013 = vunpack.c.h.b16 %v967
        %v1014 = vunpack.c.l.b16 %v968
        %v1015 = vunpack.c.h.b16 %v968
        %v1016 = vunpack.c.l.b16 %v969
        %v1017 = vunpack.c.h.b16 %v969
        %v1018 = vpack.c.b16 %v988, %v986
        %v1019 = vpack.c.b16 %v989, %v987
        %v1020 = vpack.c.b16 %v992, %v990
        %v1021 = vpack.c.b16 %v993, %v991
        %v1022 = vpack.c.b16 %v996, %v994
        %v1023 = vpack.c.b16 %v997, %v995
        %v1024 = vpack.c.b16 %v1000, %v998
        %v1025 = vpack.c.b16 %v1001, %v999
        %v1026 = vpack.c.b16 %v1004, %v1002
        %v1027 = vpack.c.b16 %v1005, %v1003
        %v1028 = vpack.c.b16 %v1008, %v1006
        %v1029 = vpack.c.b16 %v1009, %v1007
        %v1030 = vpack.c.b16 %v1012, %v1010
        %v1031 = vpack.c.b16 %v1013, %v1011
        %v1032 = vpack.c.b16 %v1016, %v1014
        %v1033 = vpack.c.b16 %v1017, %v1015
        %1050 = vmatprep.subr.bf16.mxu0 %v1019
        %1051 = vmatpush1.bf16.msra.mxu0 %v1018
        %1052 = vmatprep.subr.bf16.mxu0 %v1021
        %1053 = vmatpush1.bf16.msra.mxu0 %v1020
        %1054 = vmatprep.subr.bf16.mxu0 %v1023
        %1055 = vmatpush1.bf16.msra.mxu0 %v1022
        %1056 = vmatprep.subr.bf16.mxu0 %v1025
        %1057 = vmatpush1.bf16.msra.mxu0 %v1024
        %1058 = vmatprep.subr.bf16.mxu0 %v1027
        %1059 = vmatpush1.bf16.msra.mxu0 %v1026
        %1060 = vmatprep.subr.bf16.mxu0 %v1029
        %1061 = vmatpush1.bf16.msra.mxu0 %v1028
        %1062 = vmatprep.subr.bf16.mxu0 %v1031
        %1063 = vmatpush1.bf16.msra.mxu0 %v1030
        %1064 = vmatprep.subr.bf16.mxu0 %v1033
        %1065 = vmatpush1.bf16.msra.mxu0 %v1032
        %1066 = vmatprep.subr.bf16.mxu0 0
        %1067 = vmatpush1.bf16.msra.mxu0 0
        %1068 = vmatprep.subr.bf16.mxu0 0
        %1069 = vmatpush1.bf16.msra.mxu0 0
        %1070 = vmatprep.subr.bf16.mxu0 0
        %1071 = vmatpush1.bf16.msra.mxu0 0
        %1072 = vmatprep.subr.bf16.mxu0 0
        %1073 = vmatpush1.bf16.msra.mxu0 0
        %1074 = vmatprep.subr.bf16.mxu0 0
        %1075 = vmatpush1.bf16.msra.mxu0 0
        %1076 = vmatprep.subr.bf16.mxu0 0
        %1077 = vmatpush1.bf16.msra.mxu0 0
        %1078 = vmatprep.subr.bf16.mxu0 0
        %1079 = vmatpush1.bf16.msra.mxu0 0
        %1080 = vmatprep.subr.bf16.mxu0 0
        %1081 = vmatpush1.bf16.msra.mxu0 0
        %1082 = vmatprep.mubr.bf16.mxu0 0
        %1083 = vmatmul.mubr.bf16.gmra.mrb[0].mxu0 %v953
        %v1084 = vpop.f32.mrb[0].mxu0
        %v1085 = vadd.f32 0.0, %v1084
        %v1086 = vpop.f32.mrb[0].mxu0
        %v1087 = vadd.f32 0.0, %v1086
        %v1088 = vpop.f32.mrb[0].mxu0
        %v1089 = vadd.f32 0.0, %v1088
        %v1090 = vpop.f32.mrb[0].mxu0
        %v1091 = vadd.f32 0.0, %v1090
        %1092 = vdwg.mxu0
        %v1093 = vld [vmem:[%s8] sm:$0x1]
        %v1095 = vlaneseq
        %v1096 = vshrl.u32 %v1095, 7
        %v1097 = vsub.s32 0, %v1096
        %v1098 = vrot.slane %v1093, %v1097
        %v1100 = vadd.f32 %v1085, %v1098
        %v1101 = vadd.f32 %v1089, %v1098
        %v1102 = vmax.f32 %v1100, 0.0
        %v1103 = vmax.f32 %v1101, 0.0
        %v1104 = vand.u32 2147483647, %v1100
        %v1105 = vand.u32 2147483647, %v1101
        %v1106 = vsub.f32 0.0, %v1104
        %v1107 = vsub.f32 0.0, %v1105
        %v1108 = vmul.f32 %v1106, 1.442695
        %v1109 = vpow.pop %v1108
        %v1110 = vmul.f32 %v1107, 1.442695
        %v1111 = vpow.pop %v1110
        %v1112 = vadd.f32 %v1109, 1.0
        %v1113 = vadd.f32 %v1111, 1.0
        %v1114 = vlog2.pop %v1112
        %v1115 = vmul.f32 %v1114, 0.6931472
        %v1116 = vlog2.pop %v1113
        %v1117 = vmul.f32 %v1116, 0.6931472
        %v1118 = vadd.f32 %v1102, %v1115
        %v1119 = vadd.f32 %v1103, %v1117
        %s1120 = scalar_lea.vmem [#allocation3], 16
        %1121 = vst [vmem:[%s1120] sm:$0xff] %v1118
        %1122 = vst [vmem:[%s1120 + $0x8] sm:$0xff] %v1119
        %s1123 = scalar_lea.vmem [#allocation4], 16
        %1124 = vst.msk [vmem:[%s1123] sm:$0xff] %vm937, %v1087
        %1125 = vst.msk [vmem:[%s1123 + $0x8] sm:$0xff] %vm937, %v1091
        %1128 = vrot.lane.b32.xlu0 %v1087, 120
        %v1129 = vpop.permute.xlu0 %1128
        %1130 = vrot.lane.b32.xlu0 %v1091, 120
        %v1131 = vpop.permute.xlu0 %1130
        %s1134 = scalar_lea.vmem [#allocation5], 16
        %1135 = vst.msk [vmem:[%s1134] sm:$0xff] %vm937, %v1129
        %1136 = vst.msk [vmem:[%s1134 + $0x8] sm:$0xff] %vm937, %v1131
        %v1137 = vld [vmem:[%s9] sm:$0xff]
        %v1138 = vld [vmem:[%s10] sm:$0x1]
        loop: start=0, step=1, limit=2
        $region69: #{tpu_custom_call.1} parent=63 // loop_pre_header
          _
        $region70: #{tpu_custom_call.1} parent=63 // loop_header
          %s1140 = sphi 0, %s1144
          %p1141 = scmp.ge.s32.totalorder %s1140, 2
          %v1145 = vphi 0.0, %v1675
          %v1146 = vphi 0.0, %v1677
        $region71: #{tpu_custom_call.1} parent=63 // loop_header_branch
          %1143 = sbr.rel (%p1141) target = $region75
        $region72: #{tpu_custom_call.1} parent=63 // loop_body
          %s1147 = smul.u32 %s1140, 8
          %s1148 = scalar_lea.vmem [#allocation3], %s1147
          %v1149 = vld [vmem:[%s1148] sm:$0xff]
          %s1150 = sadd.s32 %s1147, 16
          %s1151 = scalar_lea.vmem [#allocation3], %s1150
          %v1152 = vld [vmem:[%s1151] sm:$0xff]
          %s1153 = scalar_lea.vmem [#allocation2], %s1147
          %v1154 = vld [vmem:[%s1153] sm:$0xff]
          %s1155 = scalar_lea.vmem [#allocation2], %s1150
          %v1156 = vld [vmem:[%s1155] sm:$0xff]
          %s1157 = scalar_lea.vmem [#allocation4], %s1147
          %v1158 = vld [vmem:[%s1157] sm:$0xff]
          %s1159 = scalar_lea.vmem [#allocation4], %s1150
          %v1160 = vld [vmem:[%s1159] sm:$0xff]
          %s1161 = scalar_lea.vmem [#allocation5], %s1147
          %v1162 = vld [vmem:[%s1161] sm:$0xff]
          %s1163 = scalar_lea.vmem [#allocation5], %s1150
          %v1164 = vld [vmem:[%s1163] sm:$0xff]
          %v1165 = vmul.f32 %v1149, %v1154
          %v1166 = vmul.f32 %v1152, %v1156
          %v1167 = vlaneseq
          %v1168 = vshrl.u32 %v1167, 7
          %v1169 = vsub.s32 0, %v1168
          %v1170 = vrot.slane %v1149, %v1169
          %v1171 = vmul.f32 %v1170, %v1137
          %v1172 = vmul.f32 %v1171, 1.442695
          %v1173 = vpow.pop %v1172
          %v1174 = vlaneseq
          %v1175 = vshrl.u32 %v1174, 7
          %v1176 = vsub.s32 0, %v1175
          %v1177 = vrot.slane %v1152, %v1176
          %v1178 = vmul.f32 %v1177, %v1137
          %v1179 = vmul.f32 %v1178, 1.442695
          %v1180 = vpow.pop %v1179
          %v1181 = vlaneseq
          %v1182 = vshrl.u32 %v1181, 7
          %v1183 = vsub.s32 0, %v1182
          %v1184 = vrot.slane %v1158, %v1183
          %1186 = vbcast.lane.b32.xlu0 %v1184, 256
          %v1187 = vpop.permute.xlu0 %1186
          %v1188 = vlaneseq
          %v1189 = vshrl.u32 %v1188, 7
          %v1190 = vsub.s32 0, %v1189
          %v1191 = vrot.slane %v1165, %v1190
          %v1192 = vmul.f32 %v1187, %v1191
          %v1193 = vlaneseq
          %v1194 = vshrl.u32 %v1193, 7
          %v1195 = vsub.s32 0, %v1194
          %v1196 = vrot.slane %v1160, %v1195
          %1198 = vbcast.lane.b32.xlu0 %v1196, 256
          %v1199 = vpop.permute.xlu0 %1198
          %v1200 = vlaneseq
          %v1201 = vshrl.u32 %v1200, 7
          %v1202 = vsub.s32 0, %v1201
          %v1203 = vrot.slane %v1166, %v1202
          %v1204 = vmul.f32 %v1199, %v1203
          %v1205 = vlaneseq
          %v1206 = vshrl.u32 %v1205, 7
          %v1207 = vsub.s32 0, %v1206
          %v1208 = vrot.slane %v1162, %v1207
          %1210 = vbcast.lane.b32.xlu0 %v1208, 256
          %v1211 = vpop.permute.xlu0 %1210
          %v1212 = vlaneseq
          %v1213 = vshrl.u32 %v1212, 7
          %v1214 = vsub.s32 0, %v1213
          %v1215 = vrot.slane %v1164, %v1214
          %1217 = vbcast.lane.b32.xlu0 %v1215, 256
          %v1218 = vpop.permute.xlu0 %1217
          %v1219 = vlaneseq
          %v1220 = vshrl.u32 %v1219, 7
          %v1221 = vsub.s32 1, %v1220
          %v1222 = vrot.slane %v1149, %v1221
          %v1223 = vmul.f32 %v1222, %v1137
          %v1224 = vmul.f32 %v1223, 1.442695
          %v1225 = vpow.pop %v1224
          %v1226 = vlaneseq
          %v1227 = vshrl.u32 %v1226, 7
          %v1228 = vsub.s32 1, %v1227
          %v1229 = vrot.slane %v1152, %v1228
          %v1230 = vmul.f32 %v1229, %v1137
          %v1231 = vmul.f32 %v1230, 1.442695
          %v1232 = vpow.pop %v1231
          %v1233 = vlaneseq
          %v1234 = vshrl.u32 %v1233, 7
          %v1235 = vsub.s32 1, %v1234
          %v1236 = vrot.slane %v1158, %v1235
          %1238 = vbcast.lane.b32.xlu0 %v1236, 256
          %v1239 = vpop.permute.xlu0 %1238
          %v1240 = vlaneseq
          %v1241 = vshrl.u32 %v1240, 7
          %v1242 = vsub.s32 1, %v1241
          %v1243 = vrot.slane %v1165, %v1242
          %v1244 = vmul.f32 %v1239, %v1243
          %v1245 = vlaneseq
          %v1246 = vshrl.u32 %v1245, 7
          %v1247 = vsub.s32 1, %v1246
          %v1248 = vrot.slane %v1160, %v1247
          %1250 = vbcast.lane.b32.xlu0 %v1248, 256
          %v1251 = vpop.permute.xlu0 %1250
          %v1252 = vlaneseq
          %v1253 = vshrl.u32 %v1252, 7
          %v1254 = vsub.s32 1, %v1253
          %v1255 = vrot.slane %v1166, %v1254
          %v1256 = vmul.f32 %v1251, %v1255
          %v1257 = vlaneseq
          %v1258 = vshrl.u32 %v1257, 7
          %v1259 = vsub.s32 1, %v1258
          %v1260 = vrot.slane %v1162, %v1259
          %1262 = vbcast.lane.b32.xlu0 %v1260, 256
          %v1263 = vpop.permute.xlu0 %1262
          %v1264 = vlaneseq
          %v1265 = vshrl.u32 %v1264, 7
          %v1266 = vsub.s32 1, %v1265
          %v1267 = vrot.slane %v1164, %v1266
          %1269 = vbcast.lane.b32.xlu0 %v1267, 256
          %v1270 = vpop.permute.xlu0 %1269
          %v1271 = vlaneseq
          %v1272 = vshrl.u32 %v1271, 7
          %v1273 = vsub.s32 2, %v1272
          %v1274 = vrot.slane %v1149, %v1273
          %v1275 = vmul.f32 %v1274, %v1137
          %v1276 = vmul.f32 %v1275, 1.442695
          %v1277 = vpow.pop %v1276
          %v1278 = vlaneseq
          %v1279 = vshrl.u32 %v1278, 7
          %v1280 = vsub.s32 2, %v1279
          %v1281 = vrot.slane %v1152, %v1280
          %v1282 = vmul.f32 %v1281, %v1137
          %v1283 = vmul.f32 %v1282, 1.442695
          %v1284 = vpow.pop %v1283
          %v1285 = vlaneseq
          %v1286 = vshrl.u32 %v1285, 7
          %v1287 = vsub.s32 2, %v1286
          %v1288 = vrot.slane %v1158, %v1287
          %1290 = vbcast.lane.b32.xlu0 %v1288, 256
          %v1291 = vpop.permute.xlu0 %1290
          %v1292 = vlaneseq
          %v1293 = vshrl.u32 %v1292, 7
          %v1294 = vsub.s32 2, %v1293
          %v1295 = vrot.slane %v1165, %v1294
          %v1296 = vmul.f32 %v1291, %v1295
          %v1297 = vlaneseq
          %v1298 = vshrl.u32 %v1297, 7
          %v1299 = vsub.s32 2, %v1298
          %v1300 = vrot.slane %v1160, %v1299
          %1302 = vbcast.lane.b32.xlu0 %v1300, 256
          %v1303 = vpop.permute.xlu0 %1302
          %v1304 = vlaneseq
          %v1305 = vshrl.u32 %v1304, 7
          %v1306 = vsub.s32 2, %v1305
          %v1307 = vrot.slane %v1166, %v1306
          %v1308 = vmul.f32 %v1303, %v1307
          %v1309 = vlaneseq
          %v1310 = vshrl.u32 %v1309, 7
          %v1311 = vsub.s32 2, %v1310
          %v1312 = vrot.slane %v1162, %v1311
          %1314 = vbcast.lane.b32.xlu0 %v1312, 256
          %v1315 = vpop.permute.xlu0 %1314
          %v1316 = vlaneseq
          %v1317 = vshrl.u32 %v1316, 7
          %v1318 = vsub.s32 2, %v1317
          %v1319 = vrot.slane %v1164, %v1318
          %1321 = vbcast.lane.b32.xlu0 %v1319, 256
          %v1322 = vpop.permute.xlu0 %1321
          %v1323 = vlaneseq
          %v1324 = vshrl.u32 %v1323, 7
          %v1325 = vsub.s32 3, %v1324
          %v1326 = vrot.slane %v1149, %v1325
          %v1327 = vmul.f32 %v1326, %v1137
          %v1328 = vmul.f32 %v1327, 1.442695
          %v1329 = vpow.pop %v1328
          %v1330 = vlaneseq
          %v1331 = vshrl.u32 %v1330, 7
          %v1332 = vsub.s32 3, %v1331
          %v1333 = vrot.slane %v1152, %v1332
          %v1334 = vmul.f32 %v1333, %v1137
          %v1335 = vmul.f32 %v1334, 1.442695
          %v1336 = vpow.pop %v1335
          %v1337 = vlaneseq
          %v1338 = vshrl.u32 %v1337, 7
          %v1339 = vsub.s32 3, %v1338
          %v1340 = vrot.slane %v1158, %v1339
          %1342 = vbcast.lane.b32.xlu0 %v1340, 256
          %v1343 = vpop.permute.xlu0 %1342
          %v1344 = vlaneseq
          %v1345 = vshrl.u32 %v1344, 7
          %v1346 = vsub.s32 3, %v1345
          %v1347 = vrot.slane %v1165, %v1346
          %v1348 = vmul.f32 %v1343, %v1347
          %v1349 = vlaneseq
          %v1350 = vshrl.u32 %v1349, 7
          %v1351 = vsub.s32 3, %v1350
          %v1352 = vrot.slane %v1160, %v1351
          %1354 = vbcast.lane.b32.xlu0 %v1352, 256
          %v1355 = vpop.permute.xlu0 %1354
          %v1356 = vlaneseq
          %v1357 = vshrl.u32 %v1356, 7
          %v1358 = vsub.s32 3, %v1357
          %v1359 = vrot.slane %v1166, %v1358
          %v1360 = vmul.f32 %v1355, %v1359
          %v1361 = vlaneseq
          %v1362 = vshrl.u32 %v1361, 7
          %v1363 = vsub.s32 3, %v1362
          %v1364 = vrot.slane %v1162, %v1363
          %1366 = vbcast.lane.b32.xlu0 %v1364, 256
          %v1367 = vpop.permute.xlu0 %1366
          %v1368 = vlaneseq
          %v1369 = vshrl.u32 %v1368, 7
          %v1370 = vsub.s32 3, %v1369
          %v1371 = vrot.slane %v1164, %v1370
          %1373 = vbcast.lane.b32.xlu0 %v1371, 256
          %v1374 = vpop.permute.xlu0 %1373
          %v1375 = vlaneseq
          %v1376 = vshrl.u32 %v1375, 7
          %v1377 = vsub.s32 4, %v1376
          %v1378 = vrot.slane %v1149, %v1377
          %v1379 = vmul.f32 %v1378, %v1137
          %v1380 = vmul.f32 %v1379, 1.442695
          %v1381 = vpow.pop %v1380
          %v1382 = vlaneseq
          %v1383 = vshrl.u32 %v1382, 7
          %v1384 = vsub.s32 4, %v1383
          %v1385 = vrot.slane %v1152, %v1384
          %v1386 = vmul.f32 %v1385, %v1137
          %v1387 = vmul.f32 %v1386, 1.442695
          %v1388 = vpow.pop %v1387
          %v1389 = vlaneseq
          %v1390 = vshrl.u32 %v1389, 7
          %v1391 = vsub.s32 4, %v1390
          %v1392 = vrot.slane %v1158, %v1391
          %1394 = vbcast.lane.b32.xlu0 %v1392, 256
          %v1395 = vpop.permute.xlu0 %1394
          %v1396 = vlaneseq
          %v1397 = vshrl.u32 %v1396, 7
          %v1398 = vsub.s32 4, %v1397
          %v1399 = vrot.slane %v1165, %v1398
          %v1400 = vmul.f32 %v1395, %v1399
          %v1401 = vlaneseq
          %v1402 = vshrl.u32 %v1401, 7
          %v1403 = vsub.s32 4, %v1402
          %v1404 = vrot.slane %v1160, %v1403
          %1406 = vbcast.lane.b32.xlu0 %v1404, 256
          %v1407 = vpop.permute.xlu0 %1406
          %v1408 = vlaneseq
          %v1409 = vshrl.u32 %v1408, 7
          %v1410 = vsub.s32 4, %v1409
          %v1411 = vrot.slane %v1166, %v1410
          %v1412 = vmul.f32 %v1407, %v1411
          %v1413 = vlaneseq
          %v1414 = vshrl.u32 %v1413, 7
          %v1415 = vsub.s32 4, %v1414
          %v1416 = vrot.slane %v1162, %v1415
          %1418 = vbcast.lane.b32.xlu0 %v1416, 256
          %v1419 = vpop.permute.xlu0 %1418
          %v1420 = vlaneseq
          %v1421 = vshrl.u32 %v1420, 7
          %v1422 = vsub.s32 4, %v1421
          %v1423 = vrot.slane %v1164, %v1422
          %1425 = vbcast.lane.b32.xlu0 %v1423, 256
          %v1426 = vpop.permute.xlu0 %1425
          %v1427 = vlaneseq
          %v1428 = vshrl.u32 %v1427, 7
          %v1429 = vsub.s32 5, %v1428
          %v1430 = vrot.slane %v1149, %v1429
          %v1431 = vmul.f32 %v1430, %v1137
          %v1432 = vmul.f32 %v1431, 1.442695
          %v1433 = vpow.pop %v1432
          %v1434 = vlaneseq
          %v1435 = vshrl.u32 %v1434, 7
          %v1436 = vsub.s32 5, %v1435
          %v1437 = vrot.slane %v1152, %v1436
          %v1438 = vmul.f32 %v1437, %v1137
          %v1439 = vmul.f32 %v1438, 1.442695
          %v1440 = vpow.pop %v1439
          %v1441 = vlaneseq
          %v1442 = vshrl.u32 %v1441, 7
          %v1443 = vsub.s32 5, %v1442
          %v1444 = vrot.slane %v1158, %v1443
          %1446 = vbcast.lane.b32.xlu0 %v1444, 256
          %v1447 = vpop.permute.xlu0 %1446
          %v1448 = vlaneseq
          %v1449 = vshrl.u32 %v1448, 7
          %v1450 = vsub.s32 5, %v1449
          %v1451 = vrot.slane %v1165, %v1450
          %v1452 = vmul.f32 %v1447, %v1451
          %v1453 = vlaneseq
          %v1454 = vshrl.u32 %v1453, 7
          %v1455 = vsub.s32 5, %v1454
          %v1456 = vrot.slane %v1160, %v1455
          %1458 = vbcast.lane.b32.xlu0 %v1456, 256
          %v1459 = vpop.permute.xlu0 %1458
          %v1460 = vlaneseq
          %v1461 = vshrl.u32 %v1460, 7
          %v1462 = vsub.s32 5, %v1461
          %v1463 = vrot.slane %v1166, %v1462
          %v1464 = vmul.f32 %v1459, %v1463
          %v1465 = vlaneseq
          %v1466 = vshrl.u32 %v1465, 7
          %v1467 = vsub.s32 5, %v1466
          %v1468 = vrot.slane %v1162, %v1467
          %1470 = vbcast.lane.b32.xlu0 %v1468, 256
          %v1471 = vpop.permute.xlu0 %1470
          %v1472 = vlaneseq
          %v1473 = vshrl.u32 %v1472, 7
          %v1474 = vsub.s32 5, %v1473
          %v1475 = vrot.slane %v1164, %v1474
          %1477 = vbcast.lane.b32.xlu0 %v1475, 256
          %v1478 = vpop.permute.xlu0 %1477
          %v1479 = vlaneseq
          %v1480 = vshrl.u32 %v1479, 7
          %v1481 = vsub.s32 6, %v1480
          %v1482 = vrot.slane %v1149, %v1481
          %v1483 = vmul.f32 %v1482, %v1137
          %v1484 = vmul.f32 %v1483, 1.442695
          %v1485 = vpow.pop %v1484
          %v1486 = vlaneseq
          %v1487 = vshrl.u32 %v1486, 7
          %v1488 = vsub.s32 6, %v1487
          %v1489 = vrot.slane %v1152, %v1488
          %v1490 = vmul.f32 %v1489, %v1137
          %v1491 = vmul.f32 %v1490, 1.442695
          %v1492 = vpow.pop %v1491
          %v1493 = vlaneseq
          %v1494 = vshrl.u32 %v1493, 7
          %v1495 = vsub.s32 6, %v1494
          %v1496 = vrot.slane %v1158, %v1495
          %1498 = vbcast.lane.b32.xlu0 %v1496, 256
          %v1499 = vpop.permute.xlu0 %1498
          %v1500 = vlaneseq
          %v1501 = vshrl.u32 %v1500, 7
          %v1502 = vsub.s32 6, %v1501
          %v1503 = vrot.slane %v1165, %v1502
          %v1504 = vmul.f32 %v1499, %v1503
          %v1505 = vlaneseq
          %v1506 = vshrl.u32 %v1505, 7
          %v1507 = vsub.s32 6, %v1506
          %v1508 = vrot.slane %v1160, %v1507
          %1510 = vbcast.lane.b32.xlu0 %v1508, 256
          %v1511 = vpop.permute.xlu0 %1510
          %v1512 = vlaneseq
          %v1513 = vshrl.u32 %v1512, 7
          %v1514 = vsub.s32 6, %v1513
          %v1515 = vrot.slane %v1166, %v1514
          %v1516 = vmul.f32 %v1511, %v1515
          %v1517 = vlaneseq
          %v1518 = vshrl.u32 %v1517, 7
          %v1519 = vsub.s32 6, %v1518
          %v1520 = vrot.slane %v1162, %v1519
          %1522 = vbcast.lane.b32.xlu0 %v1520, 256
          %v1523 = vpop.permute.xlu0 %1522
          %v1524 = vlaneseq
          %v1525 = vshrl.u32 %v1524, 7
          %v1526 = vsub.s32 6, %v1525
          %v1527 = vrot.slane %v1164, %v1526
          %1529 = vbcast.lane.b32.xlu0 %v1527, 256
          %v1530 = vpop.permute.xlu0 %1529
          %v1531 = vlaneseq
          %v1532 = vshrl.u32 %v1531, 7
          %v1533 = vsub.s32 7, %v1532
          %v1534 = vrot.slane %v1149, %v1533
          %v1535 = vmul.f32 %v1534, %v1137
          %v1536 = vmul.f32 %v1535, 1.442695
          %v1537 = vpow.pop %v1536
          %v1538 = vlaneseq
          %v1539 = vshrl.u32 %v1538, 7
          %v1540 = vsub.s32 7, %v1539
          %v1541 = vrot.slane %v1152, %v1540
          %v1542 = vmul.f32 %v1541, %v1137
          %v1543 = vmul.f32 %v1542, 1.442695
          %v1544 = vpow.pop %v1543
          %v1545 = vlaneseq
          %v1546 = vshrl.u32 %v1545, 7
          %v1547 = vsub.s32 7, %v1546
          %v1548 = vrot.slane %v1158, %v1547
          %1550 = vbcast.lane.b32.xlu0 %v1548, 256
          %v1551 = vpop.permute.xlu0 %1550
          %v1552 = vlaneseq
          %v1553 = vshrl.u32 %v1552, 7
          %v1554 = vsub.s32 7, %v1553
          %v1555 = vrot.slane %v1165, %v1554
          %v1556 = vmul.f32 %v1551, %v1555
          %v1557 = vlaneseq
          %v1558 = vshrl.u32 %v1557, 7
          %v1559 = vsub.s32 7, %v1558
          %v1560 = vrot.slane %v1160, %v1559
          %1562 = vbcast.lane.b32.xlu0 %v1560, 256
          %v1563 = vpop.permute.xlu0 %1562
          %v1564 = vlaneseq
          %v1565 = vshrl.u32 %v1564, 7
          %v1566 = vsub.s32 7, %v1565
          %v1567 = vrot.slane %v1166, %v1566
          %v1568 = vmul.f32 %v1563, %v1567
          %v1569 = vlaneseq
          %v1570 = vshrl.u32 %v1569, 7
          %v1571 = vsub.s32 7, %v1570
          %v1572 = vrot.slane %v1162, %v1571
          %1574 = vbcast.lane.b32.xlu0 %v1572, 256
          %v1575 = vpop.permute.xlu0 %1574
          %v1576 = vlaneseq
          %v1577 = vshrl.u32 %v1576, 7
          %v1578 = vsub.s32 7, %v1577
          %v1579 = vrot.slane %v1164, %v1578
          %1581 = vbcast.lane.b32.xlu0 %v1579, 256
          %v1582 = vpop.permute.xlu0 %1581
          %v1583 = vmul.f32 %v1173, %v1145
          %v1584 = vadd.f32 %v1583, %v1192
          %v1585 = vmul.f32 %v1180, %v1146
          %v1586 = vadd.f32 %v1585, %v1204
          %v1587 = vmul.f32 %v1584, %v1211
          %v1588 = vmul.f32 %v1586, %v1218
          %v1589 = vadd.f32 %v1587, %v1588
          %v1590 = vrot.slane %v1589, 4
          %v1591 = vadd.f32 %v1589, %v1590
          %v1592 = vrot.slane %v1591, 2
          %v1593 = vadd.f32 %v1591, %v1592
          %v1594 = vrot.slane %v1593, 1
          %v1595 = vadd.f32 %v1593, %v1594
          %v1596 = vmul.f32 %v1225, %v1584
          %v1597 = vadd.f32 %v1596, %v1244
          %v1598 = vmul.f32 %v1232, %v1586
          %v1599 = vadd.f32 %v1598, %v1256
          %v1600 = vmul.f32 %v1597, %v1263
          %v1601 = vmul.f32 %v1599, %v1270
          %v1602 = vadd.f32 %v1600, %v1601
          %v1603 = vrot.slane %v1602, 4
          %v1604 = vadd.f32 %v1602, %v1603
          %v1605 = vrot.slane %v1604, 2
          %v1606 = vadd.f32 %v1604, %v1605
          %v1607 = vrot.slane %v1606, 1
          %v1608 = vadd.f32 %v1606, %v1607
          %v1609 = vmul.f32 %v1277, %v1597
          %v1610 = vadd.f32 %v1609, %v1296
          %v1611 = vmul.f32 %v1284, %v1599
          %v1612 = vadd.f32 %v1611, %v1308
          %v1613 = vmul.f32 %v1610, %v1315
          %v1614 = vmul.f32 %v1612, %v1322
          %v1615 = vadd.f32 %v1613, %v1614
          %v1616 = vrot.slane %v1615, 4
          %v1617 = vadd.f32 %v1615, %v1616
          %v1618 = vrot.slane %v1617, 2
          %v1619 = vadd.f32 %v1617, %v1618
          %v1620 = vrot.slane %v1619, 1
          %v1621 = vadd.f32 %v1619, %v1620
          %v1622 = vmul.f32 %v1329, %v1610
          %v1623 = vadd.f32 %v1622, %v1348
          %v1624 = vmul.f32 %v1336, %v1612
          %v1625 = vadd.f32 %v1624, %v1360
          %v1626 = vmul.f32 %v1623, %v1367
          %v1627 = vmul.f32 %v1625, %v1374
          %v1628 = vadd.f32 %v1626, %v1627
          %v1629 = vrot.slane %v1628, 4
          %v1630 = vadd.f32 %v1628, %v1629
          %v1631 = vrot.slane %v1630, 2
          %v1632 = vadd.f32 %v1630, %v1631
          %v1633 = vrot.slane %v1632, 1
          %v1634 = vadd.f32 %v1632, %v1633
          %v1635 = vmul.f32 %v1381, %v1623
          %v1636 = vadd.f32 %v1635, %v1400
          %v1637 = vmul.f32 %v1388, %v1625
          %v1638 = vadd.f32 %v1637, %v1412
          %v1639 = vmul.f32 %v1636, %v1419
          %v1640 = vmul.f32 %v1638, %v1426
          %v1641 = vadd.f32 %v1639, %v1640
          %v1642 = vrot.slane %v1641, 4
          %v1643 = vadd.f32 %v1641, %v1642
          %v1644 = vrot.slane %v1643, 2
          %v1645 = vadd.f32 %v1643, %v1644
          %v1646 = vrot.slane %v1645, 1
          %v1647 = vadd.f32 %v1645, %v1646
          %v1648 = vmul.f32 %v1433, %v1636
          %v1649 = vadd.f32 %v1648, %v1452
          %v1650 = vmul.f32 %v1440, %v1638
          %v1651 = vadd.f32 %v1650, %v1464
          %v1652 = vmul.f32 %v1649, %v1471
          %v1653 = vmul.f32 %v1651, %v1478
          %v1654 = vadd.f32 %v1652, %v1653
          %v1655 = vrot.slane %v1654, 4
          %v1656 = vadd.f32 %v1654, %v1655
          %v1657 = vrot.slane %v1656, 2
          %v1658 = vadd.f32 %v1656, %v1657
          %v1659 = vrot.slane %v1658, 1
          %v1660 = vadd.f32 %v1658, %v1659
          %v1661 = vmul.f32 %v1485, %v1649
          %v1662 = vadd.f32 %v1661, %v1504
          %v1663 = vmul.f32 %v1492, %v1651
          %v1664 = vadd.f32 %v1663, %v1516
          %v1665 = vmul.f32 %v1662, %v1523
          %v1666 = vmul.f32 %v1664, %v1530
          %v1667 = vadd.f32 %v1665, %v1666
          %v1668 = vrot.slane %v1667, 4
          %v1669 = vadd.f32 %v1667, %v1668
          %v1670 = vrot.slane %v1669, 2
          %v1671 = vadd.f32 %v1669, %v1670
          %v1672 = vrot.slane %v1671, 1
          %v1673 = vadd.f32 %v1671, %v1672
          %v1674 = vmul.f32 %v1537, %v1662
          %v1675 = vadd.f32 %v1674, %v1556
          %v1676 = vmul.f32 %v1544, %v1664
          %v1677 = vadd.f32 %v1676, %v1568
          %v1678 = vmul.f32 %v1675, %v1575
          %v1679 = vmul.f32 %v1677, %v1582
          %v1680 = vadd.f32 %v1678, %v1679
          %v1681 = vrot.slane %v1680, 4
          %v1682 = vadd.f32 %v1680, %v1681
          %v1683 = vrot.slane %v1682, 2
          %v1684 = vadd.f32 %v1682, %v1683
          %v1685 = vrot.slane %v1684, 1
          %v1686 = vadd.f32 %v1684, %v1685
          %vm1687 = vcmask 1040384
          %v1688 = vsel %vm1687, %v1595, %v1608
          %vm1689 = vcmask 1041408
          %v1690 = vsel %vm1689, %v1688, %v1621
          %vm1691 = vcmask 1042432
          %v1692 = vsel %vm1691, %v1690, %v1634
          %vm1693 = vcmask 1043456
          %v1694 = vsel %vm1693, %v1692, %v1647
          %vm1695 = vcmask 1044480
          %v1696 = vsel %vm1695, %v1694, %v1660
          %vm1697 = vcmask 1045504
          %v1698 = vsel %vm1697, %v1696, %v1673
          %vm1699 = vcmask 1046528
          %v1700 = vsel %vm1699, %v1698, %v1686
          %v1701 = vadd.f32 %v1154, %v1156
          %v1703 = vlaneseq
          %v1704 = vshrl.u32 %v1703, 7
          %v1705 = vsub.s32 0, %v1704
          %v1706 = vrot.slane %v1138, %v1705
          %v1708 = vmul.f32 %v1701, %v1706
          %v1709 = vadd.f32 %v1700, %v1708
          %s1710 = scalar_lea.vmem [#allocation6], %s1147
          %v1711 = vld [vmem:[%s1710] sm:$0xff]
          %s1712 = scalar_lea.vmem %s366, %s1147 [#allocation7]
          %v1713 = vld [vmem:[%s1712] sm:$0xff]
          %v1714 = vmul.f32 %v1709, %v1711
          %v1715 = vadd.f32 %v1714, %v1713
          %s1716 = scalar_lea.vmem %s404, %s1147 [#allocation10]
          %1717 = vst [vmem:[%s1716] sm:$0xff] %v1715
        $region73: #{tpu_custom_call.1} parent=63 // loop_footer
          %s1144 = sadd.s32 1, %s1140
        $region74: #{tpu_custom_call.1} parent=63 // loop_footer_branch
          %1139 = sbr.rel target = $region70
        $region75: #{tpu_custom_call.1} parent=63 // loop_exit
          _
        %s1718 = sand.u32 %s272, 1
        %s1719 = scalar_lea.sflag [#allocation9], %s1718
        %s1720 = sand.u32 %s272, 1
        %s1721 = smul.addr %s1720, 16
        %s1722 = scalar_lea.vmem [#allocation10], %s1721
        // Predicated region
        $region76: #{tpu_custom_call.1} parent=63 // pred_check
          %p1723 = pneg %p282
        $region77: #{tpu_custom_call.1} parent=63 // pred_check_branch
          %1725 = sbr.rel (%p1723) target = $region79
        $region78: #{tpu_custom_call.1} parent=63 // pred_region
          %s1727 = ssub.s32 256, 256
          %1728 = vsyncadd %s1719, %s1727
          %s1729 = smul.addr %s28, 2
          %s1730 = smul.addr %s1729, 128
          %s1731 = scalar_lea.hbm %s11, %s1730
          %s1732 = sshll.u32 %s1722, 4
          %s1733 = int_to_ptr.vmem [resolvable:$true] %s1732
          %1738 = dma.vmem_to_hbm [thread:$0]  %s1733, 256, %s1731, %s1719, 128, 128, 8
        $region79: #{tpu_custom_call.1} parent=63 // pred_fallthru
          _
      $region64: #{tpu_custom_call.1} parent=5 // pred_fallthru
        _
      %p1739 = scmp.le.s32.totalorder 2, %s23
      // Predicated region
      $region80: #{tpu_custom_call.1} parent=5 // pred_check
        %p1740 = pneg %p1739
      $region81: #{tpu_custom_call.1} parent=5 // pred_check_branch
        %1742 = sbr.rel (%p1740) target = $region83
      $region82: #{tpu_custom_call.1} parent=5 // pred_region
        %s1743 = ssub.s32 %s23, 2
        // Predicated region
        $region84: #{tpu_custom_call.1} parent=82 // pred_check
          %p1744 = pneg %p288
        $region85: #{tpu_custom_call.1} parent=82 // pred_check_branch
          %1746 = sbr.rel (%p1744) target = $region87
        $region86: #{tpu_custom_call.1} parent=82 // pred_region
          %s1747 = sand.u32 %s273, 1
          %s1748 = scalar_lea.sflag [#allocation9], %s1747
          %s1749 = sand.u32 %s273, 1
          %s1750 = smul.addr %s1749, 16
          %s1751 = scalar_lea.vmem [#allocation10], %s1750
          %1752 = dma.done %s1748, 256
        $region87: #{tpu_custom_call.1} parent=82 // pred_fallthru
          _
      $region83: #{tpu_custom_call.1} parent=5 // pred_fallthru
        _
    $region6: #{tpu_custom_call.1} parent=1 // loop_footer
      %s27 = sadd.s32 1, %s23
    $region7: #{tpu_custom_call.1} parent=1 // loop_footer_branch
      %22 = sbr.rel target = $region3
    $region8: #{tpu_custom_call.1} parent=1 // loop_exit
      _
    %1753 = vsyncpa [#allocation8], 1
    %s1754 = scalar_lea.sflag [#allocation8], 1
    %1755 = vsyncpa %s1754, 1
    %1756 = vsyncpa [#allocation9], 1
    %s1757 = scalar_lea.sflag [#allocation9], 1
    %1758 = vsyncpa %s1757, 1

</llo_original>
